<compile_context>
chip_gen: v7x
topology: tpu7x:2x2x1
jax: 0.10.0
libtpu: 0.0.40
codegen_flags: <defaults>
</compile_context>

<pallas_src>
import functools

import numpy as np

import jax
import jax.numpy as jnp
from jax.experimental import pallas as pl
from jax.experimental.pallas import tpu as pltpu


def _cdiv(a, b):
    return -(-a // b)


def _round_up(x, m):
    return ((x + m - 1) // m) * m


# ----------------------------------------------------------------------------
# Fused Pallas GEMM kernel: out = act(scale * (X @ W) + shift)
#   X, W are bf16 tiles (MXU-native); accumulation happens in f32 directly in
#   the output block (its index_map ignores k, so it stays VMEM-resident).
#   scale/shift are per-output-column f32 (bias and/or folded BatchNorm).
# ----------------------------------------------------------------------------
def _fused_matmul_kernel(x_ref, w_ref, scale_ref, shift_ref, o_ref, *, act):
    k = pl.program_id(2)

    @pl.when(k == 0)
    def _():
        o_ref[...] = jnp.zeros_like(o_ref)

    o_ref[...] += jnp.dot(x_ref[...], w_ref[...],
                          preferred_element_type=jnp.float32)

    @pl.when(k == pl.num_programs(2) - 1)
    def _():
        y = o_ref[...] * scale_ref[...] + shift_ref[...]
        if act == "relu":
            y = jnp.maximum(y, 0.0)
        elif act == "leaky_relu":
            y = jnp.where(y > 0, y, 0.2 * y)
        elif act == "sigmoid":
            y = jax.nn.sigmoid(y)
        o_ref[...] = y


def fused_matmul(x, w, scale, shift, act="none",
                 tm_max=128, tn_max=256, tk_max=2048):
    """act(scale * (x @ w) + shift); scale/shift broadcast over rows."""
    M, K = x.shape
    K2, N = w.shape
    assert K == K2
    # Adaptive tiles: as few K steps as needed (tk <= tk_max, 128-aligned) and
    # no 128x128 padding for tiny M / N problems.  Double-buffered VMEM stays
    # well under the v7x 64 MiB budget.  (v6e/v7x can raise tm_max/tn_max to
    # 256; v5e keeps 128.  Keep >=2 parallel blocks where possible for the
    # two v7x TensorCores.)
    n_m = _cdiv(M, tm_max)
    tm = _round_up(_cdiv(M, n_m), 16)
    m_pad = tm * n_m
    n_n = _cdiv(N, tn_max)
    tn = _round_up(_cdiv(N, n_n), 128)
    n_padded = tn * n_n
    n_k = _cdiv(K, tk_max)
    tk = _round_up(_cdiv(K, n_k), 128)
    k_pad = tk * n_k

    xp = jnp.pad(x.astype(jnp.bfloat16), ((0, m_pad - M), (0, k_pad - K)))
    wp = jnp.pad(w.astype(jnp.bfloat16), ((0, k_pad - K), (0, n_padded - N)))
    sp = jnp.pad(scale.astype(jnp.float32).reshape(1, N),
                 ((0, 0), (0, n_padded - N)))
    bp = jnp.pad(shift.astype(jnp.float32).reshape(1, N),
                 ((0, 0), (0, n_padded - N)))

    out = pl.pallas_call(
        functools.partial(_fused_matmul_kernel, act=act),
        out_shape=jax.ShapeDtypeStruct((m_pad, n_padded), jnp.float32),
        grid_spec=pltpu.PrefetchScalarGridSpec(
            num_scalar_prefetch=0,
            grid=(n_m, n_n, n_k),
            in_specs=[
                pl.BlockSpec((tm, tk), lambda i, j, k: (i, k)),
                pl.BlockSpec((tk, tn), lambda i, j, k: (k, j)),
                pl.BlockSpec((1, tn), lambda i, j, k: (0, j)),
                pl.BlockSpec((1, tn), lambda i, j, k: (0, j)),
            ],
            out_specs=pl.BlockSpec((tm, tn), lambda i, j, k: (i, j)),
        ),
        compiler_params=pltpu.CompilerParams(
            dimension_semantics=("parallel", "parallel", "arbitrary")),
    )(xp, wp, sp, bp)
    return out[:M, :N]


# ----------------------------------------------------------------------------
# Conv2d (NHWC) via im2col + fused GEMM (bias / BN / activation in-kernel)
# ----------------------------------------------------------------------------
def conv2d_nhwc(x, w_mat, b, ksize, padding,
                bn_scale=None, bn_shift=None, act="none"):
    # x: (N, H, W, Cin) NHWC; w_mat: (kh*kw*Cin, Cout), rows ordered
    # (dy, dx, cin) == PyTorch (Cout, Cin, kh, kw).transpose(2, 3, 1, 0).
    n, h, w, c = x.shape
    o = w_mat.shape[1]
    kh = kw = ksize
    ho = h + 2 * padding - kh + 1
    wo = w + 2 * padding - kw + 1
    if kh == 1 and kw == 1 and padding == 0:
        patches = x.reshape(n * h * w, c)
    else:
        # TODO(synk): im2col is still materialized in HBM (NHWC slice+concat,
        # no transposes).  Forming patches inside the kernel via shifted /
        # Element BlockSpec windows would cut HBM traffic further at large
        # resolutions.
        xp = jnp.pad(x, ((0, 0), (padding, padding), (padding, padding), (0, 0)))
        cols = [xp[:, dy:dy + ho, dx:dx + wo, :]
                for dy in range(kh) for dx in range(kw)]
        patches = jnp.concatenate(cols, axis=-1).reshape(n * ho * wo, kh * kw * c)

    if bn_scale is None:
        eff_scale = jnp.ones((o,), jnp.float32)
        eff_shift = b.astype(jnp.float32)
    else:
        eff_scale = bn_scale
        eff_shift = bn_scale * b + bn_shift          # scale*(XW + b) + shift

    y = fused_matmul(patches, w_mat, eff_scale, eff_shift, act=act)
    return y.reshape(n, ho, wo, o)


def conv_bn_relu(x, cp, bn, padding=1):
    s = bn["gamma"] / jnp.sqrt(bn["var"] + bn["eps"])
    t = bn["beta"] - s * bn["mean"]
    return conv2d_nhwc(x, cp["w"], cp["b"], cp["k"], padding,
                       bn_scale=s, bn_shift=t, act="relu")


def linear(x, w, b, act="none"):
    # PyTorch Linear weight layout is (out, in).
    return fused_matmul(x, w.T, jnp.ones((w.shape[0],), jnp.float32), b, act=act)


def avg_pool_flat(x):
    # AdaptiveAvgPool2d(1) + Flatten on NHWC, as a small pooling GEMM with the
    # 1/(H*W) scaling folded into the kernel epilogue (exact in f32).
    n, h, w, c = x.shape
    pool = jnp.asarray(np.kron(np.eye(n, dtype=np.float32),
                               np.ones((1, h * w), np.float32)))
    return fused_matmul(pool, x.reshape(n * h * w, c),
                        jnp.full((c,), 1.0 / (h * w), jnp.float32),
                        jnp.zeros((c,), jnp.float32))


# ----------------------------------------------------------------------------
# Bilinear upsample (align_corners=True), NHWC, single Pallas kernel:
# grid over output rows; the two source rows are gathered via scalar-prefetch
# BlockSpecs and the column interpolation is a tiny exact in-kernel matmul.
# ----------------------------------------------------------------------------
def _interp_1d(n_out, n_in):
    if n_in == 1:
        return (np.zeros(n_out, np.int32), np.zeros(n_out, np.int32),
                np.zeros(n_out, np.float32))
    scale = (n_in - 1) / (n_out - 1) if n_out > 1 else 0.0
    src = np.arange(n_out, dtype=np.float64) * scale
    i0 = np.clip(np.floor(src), 0, n_in - 2).astype(np.int32)
    frac = (src - i0).astype(np.float32)
    return i0, (i0 + 1).astype(np.int32), frac


def _bilinear_row_kernel(ilo_ref, ihi_ref, mlo_ref, mhi_ref,
                         xlo_ref, xhi_ref, o_ref):
    del ilo_ref, ihi_ref          # consumed by the index_maps (scalar prefetch)
    lo = xlo_ref[0, 0]            # (Wp, C)  row floor(src_h)
    hi = xhi_ref[0, 0]            # (Wp, C)  row floor(src_h)+1
    acc = jnp.dot(mlo_ref[0], lo, preferred_element_type=jnp.float32)
    acc += jnp.dot(mhi_ref[0], hi, preferred_element_type=jnp.float32)
    o_ref[0, 0] = acc


def bilinear_upsample_nhwc(x, out_h, out_w):
    """F.interpolate(mode='bilinear', align_corners=True) on NHWC input."""
    n, h, w, c = x.shape
    w_pad = _round_up(w, 8)
    ow_pad = _round_up(out_w, 8)
    if w_pad != w:
        x = jnp.pad(x, ((0, 0), (0, 0), (0, w_pad - w), (0, 0)))
    x = x.astype(jnp.float32)

    i0, i1, fh = _interp_1d(out_h, h)
    j0, j1, fw = _interp_1d(out_w, w)
    aw = np.zeros((ow_pad, w_pad), np.float32)      # padded rows/cols stay 0
    aw[np.arange(out_w), j0] += 1.0 - fw
    aw[np.arange(out_w), j1] += fw
    m_lo = jnp.asarray((1.0 - fh)[:, None, None] * aw[None])   # (Ho, OWp, Wp)
    m_hi = jnp.asarray(fh[:, None, None] * aw[None])

    out = pl.pallas_call(
        _bilinear_row_kernel,
        out_shape=jax.ShapeDtypeStruct((n, out_h, ow_pad, c), jnp.float32),
        grid_spec=pltpu.PrefetchScalarGridSpec(
            num_scalar_prefetch=2,
            grid=(n, out_h),
            in_specs=[
                pl.BlockSpec((1, ow_pad, w_pad),
                             lambda b, oh, lo, hi: (oh, 0, 0)),
                pl.BlockSpec((1, ow_pad, w_pad),
                             lambda b, oh, lo, hi: (oh, 0, 0)),
                pl.BlockSpec((1, 1, w_pad, c),
                             lambda b, oh, lo, hi: (b, lo[oh], 0, 0)),
                pl.BlockSpec((1, 1, w_pad, c),
                             lambda b, oh, lo, hi: (b, hi[oh], 0, 0)),
            ],
            out_specs=pl.BlockSpec((1, 1, ow_pad, c),
                                   lambda b, oh, lo, hi: (b, oh, 0, 0)),
        ),
        compiler_params=pltpu.CompilerParams(
            dimension_semantics=("parallel", "arbitrary")),
    )(jnp.asarray(i0), jnp.asarray(i1), m_lo, m_hi, x, x)
    return out[:, :, :out_w, :]


# ----------------------------------------------------------------------------
# Decoder / UpSample / weight branch (mirrors PTModel.forward, eval mode)
# ----------------------------------------------------------------------------
def feature_linear_layer(x, p):
    # Dropout(p=0.5) layers are identity in eval mode.
    x = linear(x, p["w1"], p["b1"], act="relu")     # 256 -> 128
    x = linear(x, p["w2"], p["b2"], act="relu")     # 128 -> 64
    x = linear(x, p["w3"], p["b3"], act="relu")     # 64  -> 32
    x = linear(x, p["w4"], p["b4"], act="relu")     # 32  -> 16
    x = linear(x, p["w5"], p["b5"], act="sigmoid")  # 16 -> 2 (+ PTModel.SigmoidLayer)
    return x


def upsample_block(x, concat_with, p):
    up_x = bilinear_upsample_nhwc(x, concat_with.shape[1], concat_with.shape[2])
    t = jnp.concatenate([up_x, concat_with], axis=-1)
    # UpSample.forward never applies leakyreluA (only convA, convB, leakyreluB).
    t = conv2d_nhwc(t, p["A"]["w"], p["A"]["b"], 3, 1, act="none")
    t = conv2d_nhwc(t, p["B"]["w"], p["B"]["b"], 3, 1, act="leaky_relu")
    return t


def decoder_forward(feats, p):
    x_block0, x_block1, x_block2, x_block3, x_block4 = (
        feats[3], feats[4], feats[6], feats[8], feats[12])
    x_d0 = conv2d_nhwc(jnp.maximum(x_block4, 0.0),
                       p["conv2"]["w"], p["conv2"]["b"], 1, 0)
    x_d1 = upsample_block(x_d0, x_block3, p["up1"])
    x_d2 = upsample_block(x_d1, x_block2, p["up2"])
    x_d3 = upsample_block(x_d2, x_block1, p["up3"])
    x_d4 = upsample_block(x_d3, x_block0, p["up4"])
    return conv2d_nhwc(x_d4, p["conv3"]["w"], p["conv3"]["b"], 3, 1)


def pt_model_forward(features, params):
    # features: PyTorch-style NCHW encoder feature list.  Convert the maps the
    # model consumes to NHWC once at the boundary; all compute stays NHWC.
    feats = {i: jnp.transpose(features[i].astype(jnp.float32), (0, 2, 3, 1))
             for i in (3, 4, 6, 8, 12)}
    last_block_feature = feats[12]
    # weight branch
    x1 = conv_bn_relu(last_block_feature, params["c1"], params["c1_bn"], padding=1)
    x2 = conv_bn_relu(x1, params["c2"], params["c2_bn"], padding=1)
    lin = avg_pool_flat(x2)
    weight_features = feature_linear_layer(lin, params["fll"])
    # decoder branch
    decode_nhwc = decoder_forward(feats, params["dec"])
    decode_part = jnp.transpose(decode_nhwc, (0, 3, 1, 2))   # back to NCHW
    return decode_part, weight_features


# ----------------------------------------------------------------------------
# Deterministic parameter construction (shapes from the module __init__)
# ----------------------------------------------------------------------------
def _conv_params(key, cout, cin, k):
    kw_, kb = jax.random.split(key)
    fan_in = cin * k * k
    # Stored directly in GEMM layout (kh*kw*Cin, Cout), bf16 MXU operand;
    # equivalent to PyTorch (Cout, Cin, kh, kw).transpose(2, 3, 1, 0).reshape.
    w = (jax.random.normal(kw_, (k * k * cin, cout), jnp.float32)
         / np.sqrt(fan_in)).astype(jnp.bfloat16)
    b = jax.random.normal(kb, (cout,), jnp.float32) * 0.01
    return dict(w=w, b=b, k=k)


def _linear_params(key, cout, cin):
    kw_, kb = jax.random.split(key)
    w = jax.random.normal(kw_, (cout, cin), jnp.float32) / np.sqrt(cin)
    b = jax.random.normal(kb, (cout,), jnp.float32) * 0.01
    return w, b


def _bn_params(c):
    # PyTorch BatchNorm2d defaults, eval-mode running statistics.
    return dict(gamma=jnp.ones((c,), jnp.float32),
                beta=jnp.zeros((c,), jnp.float32),
                mean=jnp.zeros((c,), jnp.float32),
                var=jnp.ones((c,), jnp.float32),
                eps=1e-5)


def build_params(key):
    pk = jax.random.split(key, 16)
    params = {}
    params["c1"] = _conv_params(pk[0], 512, 1664, 11)   # ConvBNRelu(1664,512,11,pad=1)
    params["c1_bn"] = _bn_params(512)
    params["c2"] = _conv_params(pk[1], 256, 512, 9)     # ConvBNRelu(512,256,9,pad=1)
    params["c2_bn"] = _bn_params(256)

    fll = {}
    fll["w1"], fll["b1"] = _linear_params(pk[2], 128, 256)
    fll["w2"], fll["b2"] = _linear_params(pk[3], 64, 128)
    fll["w3"], fll["b3"] = _linear_params(pk[4], 32, 64)
    fll["w4"], fll["b4"] = _linear_params(pk[5], 16, 32)
    fll["w5"], fll["b5"] = _linear_params(pk[6], 2, 16)
    params["fll"] = fll

    f0 = 1664   # num_features * decoder_width
    dec = {}
    dec["conv2"] = _conv_params(pk[7], f0, f0, 1)

    def up_params(k, cin, cout):
        k1, k2 = jax.random.split(k)
        return dict(A=_conv_params(k1, cout, cin, 3),
                    B=_conv_params(k2, cout, cout, 3))

    dec["up1"] = up_params(pk[8], f0 // 1 + 256, f0 // 2)
    dec["up2"] = up_params(pk[9], f0 // 2 + 128, f0 // 4)
    dec["up3"] = up_params(pk[10], f0 // 4 + 64, f0 // 8)
    dec["up4"] = up_params(pk[11], f0 // 8 + 64, f0 // 16)
    dec["conv3"] = _conv_params(pk[12], 1, f0 // 16, 3)
    params["dec"] = dec
    return params


if __name__ == "__main__":
    key = jax.random.PRNGKey(0)
    ks = jax.random.split(key, 8)
    B = 1

    # TODO(synk): DenseNet-169 encoder not translated -- synthetic NCHW feature
    # pyramid with the exact channel counts the decoder / weight branch consume.
    # feature[12] uses the minimum spatial size (15x15) that keeps Conv_1
    # (11x11, pad 1) and Conv_2 (9x9, pad 1) valid, keeping the demo small/fast.
    feat_specs = {3: (64, 32), 4: (64, 24), 6: (128, 20), 8: (256, 16), 12: (1664, 15)}
    features = [None] * 13
    for i, (idx, (c, s)) in enumerate(sorted(feat_specs.items())):
        features[idx] = jax.random.normal(ks[i], (B, c, s, s), jnp.float32) * 0.5

    params = build_params(ks[7])

    decode_part, weight_features = pt_model_forward(features, params)
    jax.block_until_ready((decode_part, weight_features))

    assert decode_part.shape == (B, 1, 32, 32), decode_part.shape
    assert weight_features.shape == (B, 2), weight_features.shape
    assert bool(jnp.all(jnp.isfinite(decode_part)))
    assert bool(jnp.all(jnp.isfinite(weight_features)))
    print("KERNEL_OK")
</pallas_src>

<mosaic_0001>
module attributes {stable_mosaic.version = 11 : i64} {
  func.func @_fused_matmul_kernel(%arg0: i32, %arg1: i32, %arg2: i32, %arg3: memref<64x2048xbf16, #tpu.memory_space<vmem>>, %arg4: memref<2048x256xbf16, #tpu.memory_space<vmem>>, %arg5: memref<1x256xf32, #tpu.memory_space<vmem>>, %arg6: memref<1x256xf32, #tpu.memory_space<vmem>>, %arg7: memref<64x256xf32, #tpu.memory_space<vmem>>) attributes {dimension_semantics = [#tpu.dimension_semantics<parallel>, #tpu.dimension_semantics<parallel>, #tpu.dimension_semantics<arbitrary>], iteration_bounds = array<i64: 1, 2, 99>, scalar_prefetch = 0 : i64, scratch_operands = 0 : i64, tpu.core_type = #tpu.core_type<tc>, window_params = [{transform_indices = @transform_0, window_bounds = array<i64: 64, 2048>}, {transform_indices = @transform_1, window_bounds = array<i64: 2048, 256>}, {transform_indices = @transform_2, window_bounds = array<i64: 1, 256>}, {transform_indices = @transform_3, window_bounds = array<i64: 1, 256>}, {transform_indices = @transform_4, window_bounds = array<i64: 64, 256>}]} {
    %c0_i32 = arith.constant 0 : i32
    %0 = arith.cmpi eq, %arg2, %c0_i32 : i32
    %1 = arith.extui %0 : i1 to i32
    %c0_i32_0 = arith.constant 0 : i32
    %2 = arith.cmpi ne, %1, %c0_i32_0 : i32
    scf.if %2 {
      %cst_9 = arith.constant 0.000000e+00 : f32
      %12 = vector.broadcast %cst_9 : f32 to vector<64x256xf32>
      %c0_10 = arith.constant 0 : index
      %c0_11 = arith.constant 0 : index
      %13 = vector.load %arg7[%c0_10, %c0_11] : memref<64x256xf32, #tpu.memory_space<vmem>>, vector<64x256xf32>
      tpu.vector_store %arg7[%c0_10, %c0_11], %12 {strides = array<i32>} : memref<64x256xf32, #tpu.memory_space<vmem>>, vector<64x256xf32>,
    } else {
    }
    %c0 = arith.constant 0 : index
    %c0_1 = arith.constant 0 : index
    %3 = vector.load %arg7[%c0, %c0_1] : memref<64x256xf32, #tpu.memory_space<vmem>>, vector<64x256xf32>
    %c0_2 = arith.constant 0 : index
    %c0_3 = arith.constant 0 : index
    %4 = vector.load %arg3[%c0_2, %c0_3] : memref<64x2048xbf16, #tpu.memory_space<vmem>>, vector<64x2048xbf16>
    %c0_4 = arith.constant 0 : index
    %c0_5 = arith.constant 0 : index
    %5 = vector.load %arg4[%c0_4, %c0_5] : memref<2048x256xbf16, #tpu.memory_space<vmem>>, vector<2048x256xbf16>
    %cst = arith.constant dense<0.000000e+00> : vector<64x256xf32>
    %6 = tpu.matmul %4, %5, %cst {dimension_numbers = #tpu.dot_dimension_numbers<[1], [0], [0], [1], [0, 0, 1, 1], [], []>} : vector<64x2048xbf16>, vector<2048x256xbf16>, vector<64x256xf32> -> vector<64x256xf32>
    %7 = arith.addf %3, %6 : vector<64x256xf32>
    %c0_6 = arith.constant 0 : index
    %c0_7 = arith.constant 0 : index
    %8 = vector.load %arg7[%c0_6, %c0_7] : memref<64x256xf32, #tpu.memory_space<vmem>>, vector<64x256xf32>
    tpu.vector_store %arg7[%c0_6, %c0_7], %7 {strides = array<i32>} : memref<64x256xf32, #tpu.memory_space<vmem>>, vector<64x256xf32>,
    %c98_i32 = arith.constant 98 : i32
    %9 = arith.cmpi eq, %arg2, %c98_i32 : i32
    %10 = arith.extui %9 : i1 to i32
    %c0_i32_8 = arith.constant 0 : i32
    %11 = arith.cmpi ne, %10, %c0_i32_8 : i32
    scf.if %11 {
      %c0_9 = arith.constant 0 : index
      %c0_10 = arith.constant 0 : index
      %12 = vector.load %arg7[%c0_9, %c0_10] : memref<64x256xf32, #tpu.memory_space<vmem>>, vector<64x256xf32>
      %c0_11 = arith.constant 0 : index
      %c0_12 = arith.constant 0 : index
      %13 = vector.load %arg5[%c0_11, %c0_12] : memref<1x256xf32, #tpu.memory_space<vmem>>, vector<1x256xf32>
      %14 = vector.broadcast %13 : vector<1x256xf32> to vector<64x256xf32>
      %15 = arith.mulf %12, %14 : vector<64x256xf32>
      %c0_13 = arith.constant 0 : index
      %c0_14 = arith.constant 0 : index
      %16 = vector.load %arg6[%c0_13, %c0_14] : memref<1x256xf32, #tpu.memory_space<vmem>>, vector<1x256xf32>
      %17 = vector.broadcast %16 : vector<1x256xf32> to vector<64x256xf32>
      %18 = arith.addf %15, %17 : vector<64x256xf32>
      %cst_15 = arith.constant 0.000000e+00 : f32
      %19 = vector.broadcast %cst_15 : f32 to vector<64x256xf32>
      %20 = arith.maximumf %18, %19 : vector<64x256xf32>
      %c0_16 = arith.constant 0 : index
      %c0_17 = arith.constant 0 : index
      %21 = vector.load %arg7[%c0_16, %c0_17] : memref<64x256xf32, #tpu.memory_space<vmem>>, vector<64x256xf32>
      tpu.vector_store %arg7[%c0_16, %c0_17], %20 {strides = array<i32>} : memref<64x256xf32, #tpu.memory_space<vmem>>, vector<64x256xf32>,
    } else {
    }
    return
  }
  func.func @transform_0(%arg0: i32, %arg1: i32, %arg2: i32) -> (i32, i32) {
    %c0_i32 = arith.constant 0 : i32
    return %arg0, %arg2 : i32, i32
  }
  func.func @transform_1(%arg0: i32, %arg1: i32, %arg2: i32) -> (i32, i32) {
    %c0_i32 = arith.constant 0 : i32
    return %arg2, %arg1 : i32, i32
  }
  func.func @transform_2(%arg0: i32, %arg1: i32, %arg2: i32) -> (i32, i32) {
    %c0_i32 = arith.constant 0 : i32
    %c0_i32_0 = arith.constant 0 : i32
    return %c0_i32, %arg1 : i32, i32
  }
  func.func @transform_3(%arg0: i32, %arg1: i32, %arg2: i32) -> (i32, i32) {
    %c0_i32 = arith.constant 0 : i32
    %c0_i32_0 = arith.constant 0 : i32
    return %c0_i32, %arg1 : i32, i32
  }
  func.func @transform_4(%arg0: i32, %arg1: i32, %arg2: i32) -> (i32, i32) {
    %c0_i32 = arith.constant 0 : i32
    return %arg0, %arg1 : i32, i32
  }
}

</mosaic_0001>

<llo_original>
// kernel: tpu_custom_call.1
$region0: #{tpu_custom_call.1}
  #allocation0 [shape = 'u32[]', space=smem, size = 0x4, offset = 0x4, fixed_abs, tag = 'smem constant byte address 0x4 - core index']
  #allocation1 [shape = 'u32[144,128]{1,0:T(1,128)}', space=vmem, size = 0x12000, scoped, tag = 'internal scratch']
  %s0 = inlined_call_operand.hbm [shape: bf16[64,202752], index: 0, kind: input, shape index: {}]
  %s1 = inlined_call_operand.hbm [shape: bf16[202752,512], index: 1, kind: input, shape index: {}]
  %s2 = inlined_call_operand.hbm [shape: f32[1,512], index: 2, kind: input, shape index: {}]
  %s3 = inlined_call_operand.hbm [shape: f32[1,512], index: 3, kind: input, shape index: {}]
  %s4 = inlined_call_operand.hbm [shape: f32[64,512], index: 4, kind: output, shape index: {}]
  %s5 = sld [smem:[#allocation0]]
  $region73: #{tpu_custom_call.1} parent=0
    _
  %s7 = ssub.s32 1, %s5
  %s8 = scalar_select 0, %s7, %s5
  $region1: #{tpu_custom_call.1} parent=0
    #allocation2 [shape = 'u8[524288]{0}', space=vmem, size = 0x80000, scoped, tag = 'input window, operand 0']
    #allocation3 [shape = 's32[2]{0}', space=sflag, size = 0x8, scoped, tag = 'scoped memory for tpu_custom_call.1']
    #allocation4 [shape = 's32[2]{0}', space=sflag, size = 0x8, scoped, tag = 'scoped memory for tpu_custom_call.1']
    #allocation5 [shape = 'u8[2097152]{0}', space=vmem, size = 0x200000, scoped, tag = 'input window, operand 1']
    #allocation6 [shape = 's32[2]{0}', space=sflag, size = 0x8, scoped, tag = 'scoped memory for tpu_custom_call.1']
    #allocation7 [shape = 'u8[2048]{0}', space=vmem, size = 0x800, scoped, tag = 'input window, operand 2']
    #allocation8 [shape = 'u8[2048]{0}', space=vmem, size = 0x800, scoped, tag = 'input window, operand 3']
    #allocation9 [shape = 's32[2]{0}', space=sflag, size = 0x8, scoped, tag = 'scoped memory for tpu_custom_call.1']
    #allocation10 [shape = 'u8[131072]{0}', space=vmem, size = 0x20000, scoped, tag = 'output window, operand 0']
    %9 = vsyncpa [#allocation3], 0
    %s10 = scalar_lea.sflag [#allocation3], 1
    %11 = vsyncpa %s10, 0
    %12 = vsyncpa [#allocation6], 0
    %s13 = scalar_lea.sflag [#allocation6], 1
    %14 = vsyncpa %s13, 0
    %15 = vsyncpa [#allocation9], 0
    %s16 = scalar_lea.sflag [#allocation9], 1
    %17 = vsyncpa %s16, 0
    %18 = vsyncpa [#allocation4], 0
    %s19 = scalar_lea.sflag [#allocation4], 1
    %20 = vsyncpa %s19, 0
    loop: start=0, step=1, limit=200
    $region2: #{tpu_custom_call.1} parent=1 // loop_pre_header
      _
    $region3: #{tpu_custom_call.1} parent=1 // loop_header
      %s22 = sphi 0, %s26
      %p23 = scmp.ge.s32.totalorder %s22, 200
      %s29 = sphi 0, %s48
      %s30 = sphi 0, %s44
      %s31 = sphi 0, %s40
      %s32 = sphi 0, %s29
      %s33 = sphi 0, %s30
      %s34 = sphi 0, %s31
      %s35 = sphi 0, %s32
      %s36 = sphi 0, %s33
      %s37 = sphi 0, %s34
      %s53 = sphi 0, %s55
      %s56 = sphi 0, %s53
      %s57 = sphi 0, %s56
      %s73 = sphi 0, %s57
      %s81 = sphi 0, %s83
      %s84 = sphi 0, %s81
      %s85 = sphi 0, %s84
      %s101 = sphi 0, %s85
      %s107 = sphi 0, %s109
      %s110 = sphi 0, %s107
      %s111 = sphi 0, %s110
      %s127 = sphi 0, %s111
      %s133 = sphi 0, %s135
      %s136 = sphi 0, %s133
      %s137 = sphi 0, %s136
      %s153 = sphi 0, %s137
      %s161 = sphi 0, %s163
      %s164 = sphi 0, %s161
      %s165 = sphi 0, %s164
      %s181 = sphi 0, %s165
    $region4: #{tpu_custom_call.1} parent=1 // loop_header_branch
      %25 = sbr.rel (%p23) target = $region8
    $region5: #{tpu_custom_call.1} parent=1 // loop_body
      %s27 = ssub.s32 %s22, 1
      %s28 = ssub.s32 %s22, 2
      %s38 = sadd.s32 1, %s31
      %p39 = scmp.ge.s32.totalorder %s38, 99
      %s40 = scalar_select %p39, 0, %s38
      %s41 = sadd.s32 1, %s30
      %s42 = scalar_select %p39, %s41, %s30
      %p43 = scmp.ge.s32.totalorder %s42, 2
      %s44 = scalar_select %p43, 0, %s42
      %s45 = sadd.s32 1, %s29
      %s46 = scalar_select %p43, %s45, %s29
      %p47 = scmp.ge.s32.totalorder %s46, 1
      %s48 = scalar_select %p47, 0, %s46
      %s49 = ssub.s32 %s29, %s48
      %s50 = ssub.s32 %s31, %s40
      %s51 = sor.u32 %s49, %s50
      %p52 = scmp.eq.s32.totalorder %s51, 0
      %s54 = sadd.s32 %s53, 1
      %s55 = scalar_select %p52, %s53, %s54
      %p58 = pneg %p52
      %p59 = scmp.eq.s32.totalorder %s22, 197
      %p60 = por %p58, %p59
      %p61 = scmp.ne.s32.totalorder %s53, %s56
      %p62 = scmp.eq.s32.totalorder %s22, 0
      %p63 = por %p61, %p62
      %p64 = scmp.ne.s32.totalorder %s53, %s56
      %p65 = scmp.eq.s32.totalorder %s27, 197
      %p66 = por %p64, %p65
      %p67 = scmp.ne.s32.totalorder %s56, %s57
      %p68 = scmp.eq.s32.totalorder %s27, 0
      %p69 = por %p67, %p68
      %p70 = scmp.ne.s32.totalorder %s56, %s57
      %p71 = scmp.eq.s32.totalorder %s28, 197
      %p72 = por %p70, %p71
      %p74 = scmp.ne.s32.totalorder %s57, %s73
      %p75 = scmp.eq.s32.totalorder %s28, 0
      %p76 = por %p74, %p75
      %s77 = ssub.s32 %s31, %s40
      %s78 = ssub.s32 %s30, %s44
      %s79 = sor.u32 %s77, %s78
      %p80 = scmp.eq.s32.totalorder %s79, 0
      %s82 = sadd.s32 %s81, 1
      %s83 = scalar_select %p80, %s81, %s82
      %p86 = pneg %p80
      %p87 = scmp.eq.s32.totalorder %s22, 197
      %p88 = por %p86, %p87
      %p89 = scmp.ne.s32.totalorder %s81, %s84
      %p90 = scmp.eq.s32.totalorder %s22, 0
      %p91 = por %p89, %p90
      %p92 = scmp.ne.s32.totalorder %s81, %s84
      %p93 = scmp.eq.s32.totalorder %s27, 197
      %p94 = por %p92, %p93
      %p95 = scmp.ne.s32.totalorder %s84, %s85
      %p96 = scmp.eq.s32.totalorder %s27, 0
      %p97 = por %p95, %p96
      %p98 = scmp.ne.s32.totalorder %s84, %s85
      %p99 = scmp.eq.s32.totalorder %s28, 197
      %p100 = por %p98, %p99
      %p102 = scmp.ne.s32.totalorder %s85, %s101
      %p103 = scmp.eq.s32.totalorder %s28, 0
      %p104 = por %p102, %p103
      %s105 = ssub.s32 %s30, %s44
      %p106 = scmp.eq.s32.totalorder %s105, 0
      %s108 = sadd.s32 %s107, 1
      %s109 = scalar_select %p106, %s107, %s108
      %p112 = pneg %p106
      %p113 = scmp.eq.s32.totalorder %s22, 197
      %p114 = por %p112, %p113
      %p115 = scmp.ne.s32.totalorder %s107, %s110
      %p116 = scmp.eq.s32.totalorder %s22, 0
      %p117 = por %p115, %p116
      %p118 = scmp.ne.s32.totalorder %s107, %s110
      %p119 = scmp.eq.s32.totalorder %s27, 197
      %p120 = por %p118, %p119
      %p121 = scmp.ne.s32.totalorder %s110, %s111
      %p122 = scmp.eq.s32.totalorder %s27, 0
      %p123 = por %p121, %p122
      %p124 = scmp.ne.s32.totalorder %s110, %s111
      %p125 = scmp.eq.s32.totalorder %s28, 197
      %p126 = por %p124, %p125
      %p128 = scmp.ne.s32.totalorder %s111, %s127
      %p129 = scmp.eq.s32.totalorder %s28, 0
      %p130 = por %p128, %p129
      %s131 = ssub.s32 %s30, %s44
      %p132 = scmp.eq.s32.totalorder %s131, 0
      %s134 = sadd.s32 %s133, 1
      %s135 = scalar_select %p132, %s133, %s134
      %p138 = pneg %p132
      %p139 = scmp.eq.s32.totalorder %s22, 197
      %p140 = por %p138, %p139
      %p141 = scmp.ne.s32.totalorder %s133, %s136
      %p142 = scmp.eq.s32.totalorder %s22, 0
      %p143 = por %p141, %p142
      %p144 = scmp.ne.s32.totalorder %s133, %s136
      %p145 = scmp.eq.s32.totalorder %s27, 197
      %p146 = por %p144, %p145
      %p147 = scmp.ne.s32.totalorder %s136, %s137
      %p148 = scmp.eq.s32.totalorder %s27, 0
      %p149 = por %p147, %p148
      %p150 = scmp.ne.s32.totalorder %s136, %s137
      %p151 = scmp.eq.s32.totalorder %s28, 197
      %p152 = por %p150, %p151
      %p154 = scmp.ne.s32.totalorder %s137, %s153
      %p155 = scmp.eq.s32.totalorder %s28, 0
      %p156 = por %p154, %p155
      %s157 = ssub.s32 %s29, %s48
      %s158 = ssub.s32 %s30, %s44
      %s159 = sor.u32 %s157, %s158
      %p160 = scmp.eq.s32.totalorder %s159, 0
      %s162 = sadd.s32 %s161, 1
      %s163 = scalar_select %p160, %s161, %s162
      %p166 = pneg %p160
      %p167 = scmp.eq.s32.totalorder %s22, 197
      %p168 = por %p166, %p167
      %p169 = scmp.ne.s32.totalorder %s161, %s164
      %p170 = scmp.eq.s32.totalorder %s22, 0
      %p171 = por %p169, %p170
      %p172 = scmp.ne.s32.totalorder %s161, %s164
      %p173 = scmp.eq.s32.totalorder %s27, 197
      %p174 = por %p172, %p173
      %p175 = scmp.ne.s32.totalorder %s164, %s165
      %p176 = scmp.eq.s32.totalorder %s27, 0
      %p177 = por %p175, %p176
      %p178 = scmp.ne.s32.totalorder %s164, %s165
      %p179 = scmp.eq.s32.totalorder %s28, 197
      %p180 = por %p178, %p179
      %p182 = scmp.ne.s32.totalorder %s165, %s181
      %p183 = scmp.eq.s32.totalorder %s28, 0
      %p184 = por %p182, %p183
      %p185 = scmp.le.s32.totalorder 1, %s22
      %p186 = scmp.lt.s32.totalorder %s22, 199
      %p187 = pnand %p185, %p186
      %p188 = pneg %p187
      // Predicated region
      $region9: #{tpu_custom_call.1} parent=5 // pred_check
        _
      $region10: #{tpu_custom_call.1} parent=5 // pred_check_branch
        %190 = sbr.rel (%p187) target = $region12
      $region11: #{tpu_custom_call.1} parent=5 // pred_region
        %s191 = ssub.s32 %s22, 1
      $region12: #{tpu_custom_call.1} parent=5 // pred_fallthru
        _
      %p192 = scmp.lt.s32.totalorder %s22, 198
      // Predicated region
      $region13: #{tpu_custom_call.1} parent=5 // pred_check
        %p193 = pneg %p192
      $region14: #{tpu_custom_call.1} parent=5 // pred_check_branch
        %195 = sbr.rel (%p193) target = $region16
      $region15: #{tpu_custom_call.1} parent=5 // pred_region
        // Predicated region
        $region17: #{tpu_custom_call.1} parent=15 // pred_check
          %p196 = pneg %p63
        $region18: #{tpu_custom_call.1} parent=15 // pred_check_branch
          %198 = sbr.rel (%p196) target = $region20
        $region19: #{tpu_custom_call.1} parent=15 // pred_region
          %s199 = sand.u32 %s53, 1
          %s200 = scalar_lea.sflag [#allocation3], %s199
          %s201 = sand.u32 %s53, 1
          %s202 = smul.addr %s201, 512
          %s203 = scalar_lea.vmem [#allocation2], %s202
          %s204 = smul.u32 8, %s29
          %s205 = smul.u32 16, %s31
          %s207 = ssub.s32 8192, 8192
          %208 = vsyncadd %s200, %s207
          %s209 = smul.addr %s204, 1584
          %s210 = sadd.s32 %s205, %s209
          %s211 = smul.addr %s210, 64
          %s212 = scalar_lea.hbm %s0, %s211
          %s213 = sshll.u32 %s203, 4
          %s214 = int_to_ptr.vmem [resolvable:$true] %s213
          %219 = dma.hbm_to_vmem [thread:$0]  %s212, 8192, %s214, %s200, 101376, 1024, 64
        $region20: #{tpu_custom_call.1} parent=15 // pred_fallthru
          _
        // Predicated region
        $region21: #{tpu_custom_call.1} parent=15 // pred_check
          %p220 = pneg %p91
        $region22: #{tpu_custom_call.1} parent=15 // pred_check_branch
          %222 = sbr.rel (%p220) target = $region24
        $region23: #{tpu_custom_call.1} parent=15 // pred_region
          %s223 = sand.u32 %s22, 1
          %s224 = scalar_lea.sflag [#allocation6], %s223
          %s225 = sand.u32 %s81, 1
          %s226 = smul.addr %s225, 2048
          %s227 = scalar_lea.vmem [#allocation5], %s226
          %s228 = smul.u32 256, %s31
          %s229 = smul.u32 2, %s30
          %s231 = ssub.s32 32768, 32768
          %232 = vsyncadd %s224, %s231
          %s233 = smul.addr %s228, 4
          %s234 = sadd.s32 %s229, %s233
          %s235 = smul.addr %s234, 64
          %s236 = scalar_lea.hbm %s1, %s235
          %s237 = sshll.u32 %s227, 4
          %s238 = int_to_ptr.vmem [resolvable:$true] %s237
          %243 = dma.hbm_to_vmem [thread:$0]  %s236, 32768, %s238, %s224, 256, 128, 8
        $region24: #{tpu_custom_call.1} parent=15 // pred_fallthru
          _
        // Predicated region
        $region25: #{tpu_custom_call.1} parent=15 // pred_check
          %p244 = pneg %p117
        $region26: #{tpu_custom_call.1} parent=15 // pred_check_branch
          %246 = sbr.rel (%p244) target = $region28
        $region27: #{tpu_custom_call.1} parent=15 // pred_region
          %s247 = sand.u32 %s22, 1
          %s248 = scalar_lea.sflag [#allocation6], %s247
          %s249 = sand.u32 %s107, 1
          %s250 = smul.addr %s249, 2
          %s251 = scalar_lea.vmem [#allocation7], %s250
          %s252 = smul.u32 2, %s30
          %s254 = ssub.s32 32, 32
          %255 = vsyncadd %s248, %s254
          %s256 = smul.addr %s252, 16
          %s257 = scalar_lea.hbm %s2, %s256
          %s259 = sshll.u32 %s251, 4
          %s260 = int_to_ptr.vmem [resolvable:$true] %s259
          %262 = dma.hbm_to_vmem [thread:$0]  %s257, 32, %s260, %s248
        $region28: #{tpu_custom_call.1} parent=15 // pred_fallthru
          _
        // Predicated region
        $region29: #{tpu_custom_call.1} parent=15 // pred_check
          %p263 = pneg %p143
        $region30: #{tpu_custom_call.1} parent=15 // pred_check_branch
          %265 = sbr.rel (%p263) target = $region32
        $region31: #{tpu_custom_call.1} parent=15 // pred_region
          %s266 = sand.u32 %s133, 1
          %s267 = scalar_lea.sflag [#allocation9], %s266
          %s268 = sand.u32 %s133, 1
          %s269 = smul.addr %s268, 2
          %s270 = scalar_lea.vmem [#allocation8], %s269
          %s271 = smul.u32 2, %s30
          %s273 = ssub.s32 32, 32
          %274 = vsyncadd %s267, %s273
          %s275 = smul.addr %s271, 16
          %s276 = scalar_lea.hbm %s3, %s275
          %s278 = sshll.u32 %s270, 4
          %s279 = int_to_ptr.vmem [resolvable:$true] %s278
          %281 = dma.hbm_to_vmem [thread:$0]  %s276, 32, %s279, %s267
        $region32: #{tpu_custom_call.1} parent=15 // pred_fallthru
          _
      $region16: #{tpu_custom_call.1} parent=5 // pred_fallthru
        _
      %p282 = scmp.le.s32.totalorder 1, %s22
      %p283 = scmp.lt.s32.totalorder %s22, 199
      %p284 = pnand %p282, %p283
      %p285 = pneg %p284
      // Predicated region
      $region33: #{tpu_custom_call.1} parent=5 // pred_check
        _
      $region34: #{tpu_custom_call.1} parent=5 // pred_check_branch
        %287 = sbr.rel (%p284) target = $region36
      $region35: #{tpu_custom_call.1} parent=5 // pred_region
        %s288 = ssub.s32 %s22, 1
        %s289 = sand.u32 %s56, 1
        %s290 = scalar_lea.sflag [#allocation3], %s289
        %s291 = sand.u32 %s56, 1
        %s292 = smul.addr %s291, 512
        %s293 = scalar_lea.vmem [#allocation2], %s292
        // Predicated region
        $region37: #{tpu_custom_call.1} parent=35 // pred_check
          %p294 = pneg %p69
        $region38: #{tpu_custom_call.1} parent=35 // pred_check_branch
          %296 = sbr.rel (%p294) target = $region40
        $region39: #{tpu_custom_call.1} parent=35 // pred_region
          %297 = dma.done %s290, 8192
        $region40: #{tpu_custom_call.1} parent=35 // pred_fallthru
          _
        %s298 = sand.u32 %s27, 1
        %s299 = scalar_lea.sflag [#allocation6], %s298
        %s300 = sand.u32 %s84, 1
        %s301 = smul.addr %s300, 2048
        %s302 = scalar_lea.vmem [#allocation5], %s301
        // Predicated region
        $region41: #{tpu_custom_call.1} parent=35 // pred_check
          %p303 = pneg %p97
        $region42: #{tpu_custom_call.1} parent=35 // pred_check_branch
          %305 = sbr.rel (%p303) target = $region44
        $region43: #{tpu_custom_call.1} parent=35 // pred_region
          %306 = dma.done %s299, 32768
        $region44: #{tpu_custom_call.1} parent=35 // pred_fallthru
          _
        %s307 = sand.u32 %s27, 1
        %s308 = scalar_lea.sflag [#allocation6], %s307
        %s309 = sand.u32 %s110, 1
        %s310 = smul.addr %s309, 2
        %s311 = scalar_lea.vmem [#allocation7], %s310
        // Predicated region
        $region45: #{tpu_custom_call.1} parent=35 // pred_check
          %p312 = pneg %p123
        $region46: #{tpu_custom_call.1} parent=35 // pred_check_branch
          %314 = sbr.rel (%p312) target = $region48
        $region47: #{tpu_custom_call.1} parent=35 // pred_region
          %315 = dma.done %s308, 32
        $region48: #{tpu_custom_call.1} parent=35 // pred_fallthru
          _
        %s316 = sand.u32 %s136, 1
        %s317 = scalar_lea.sflag [#allocation9], %s316
        %s318 = sand.u32 %s136, 1
        %s319 = smul.addr %s318, 2
        %s320 = scalar_lea.vmem [#allocation8], %s319
        // Predicated region
        $region49: #{tpu_custom_call.1} parent=35 // pred_check
          %p321 = pneg %p149
        $region50: #{tpu_custom_call.1} parent=35 // pred_check_branch
          %323 = sbr.rel (%p321) target = $region52
        $region51: #{tpu_custom_call.1} parent=35 // pred_region
          %324 = dma.done %s317, 32
        $region52: #{tpu_custom_call.1} parent=35 // pred_fallthru
          _
        %s325 = sand.u32 %s56, 1
        %s326 = scalar_lea.sflag [#allocation3], %s325
        %s327 = sand.u32 %s56, 1
        %s328 = smul.addr %s327, 512
        %s329 = scalar_lea.vmem [#allocation2], %s328
        %p330 = pneg %p69
        %p331 = pneg %p66
        %s332 = sand.u32 %s27, 1
        %s333 = scalar_lea.sflag [#allocation6], %s332
        %s334 = sand.u32 %s84, 1
        %s335 = smul.addr %s334, 2048
        %s336 = scalar_lea.vmem [#allocation5], %s335
        %p337 = pneg %p97
        %p338 = pneg %p94
        %s339 = sand.u32 %s27, 1
        %s340 = scalar_lea.sflag [#allocation6], %s339
        %s341 = sand.u32 %s110, 1
        %s342 = smul.addr %s341, 2
        %s343 = scalar_lea.vmem [#allocation7], %s342
        %p344 = pneg %p123
        %p345 = pneg %p120
        %s346 = sand.u32 %s136, 1
        %s347 = scalar_lea.sflag [#allocation9], %s346
        %s348 = sand.u32 %s136, 1
        %s349 = smul.addr %s348, 2
        %s350 = scalar_lea.vmem [#allocation8], %s349
        %p351 = pneg %p149
        %p352 = pneg %p146
        %p353 = pneg %p177
        %p354 = pneg %p174
        %s355 = sand.u32 %s164, 1
        %s356 = scalar_lea.sflag [#allocation4], %s355
        %s357 = sand.u32 %s164, 1
        %s358 = smul.addr %s357, 128
        %s359 = scalar_lea.vmem [#allocation10], %s358
        %s360 = smul.u32 8, %s32
        %s361 = smul.u32 16, %s34
        %s362 = smul.u32 256, %s34
        %s363 = smul.u32 2, %s33
        %s364 = smul.u32 2, %s33
        %s365 = smul.u32 2, %s33
        %s366 = smul.u32 8, %s32
        %s367 = smul.u32 2, %s33
        %p368 = scmp.eq.s32.totalorder %s34, 0
        // Predicated region
        $region53: #{tpu_custom_call.1} parent=35 // pred_check
          %p369 = pneg %p368
        $region54: #{tpu_custom_call.1} parent=35 // pred_check_branch
          %371 = sbr.rel (%p369) target = $region56
        $region55: #{tpu_custom_call.1} parent=35 // pred_region
          %372 = vst [vmem:[%s359] sm:$0xff] 0.0
          %373 = vst [vmem:[%s359 + $0x8] sm:$0xff] 0.0
          %374 = vst [vmem:[%s359 + $0x10] sm:$0xff] 0.0
          %375 = vst [vmem:[%s359 + $0x18] sm:$0xff] 0.0
          %376 = vst [vmem:[%s359 + $0x20] sm:$0xff] 0.0
          %377 = vst [vmem:[%s359 + $0x28] sm:$0xff] 0.0
          %378 = vst [vmem:[%s359 + $0x30] sm:$0xff] 0.0
          %379 = vst [vmem:[%s359 + $0x38] sm:$0xff] 0.0
          %380 = vst [vmem:[%s359 + $0x40] sm:$0xff] 0.0
          %381 = vst [vmem:[%s359 + $0x48] sm:$0xff] 0.0
          %382 = vst [vmem:[%s359 + $0x50] sm:$0xff] 0.0
          %383 = vst [vmem:[%s359 + $0x58] sm:$0xff] 0.0
          %384 = vst [vmem:[%s359 + $0x60] sm:$0xff] 0.0
          %385 = vst [vmem:[%s359 + $0x68] sm:$0xff] 0.0
          %386 = vst [vmem:[%s359 + $0x70] sm:$0xff] 0.0
          %387 = vst [vmem:[%s359 + $0x78] sm:$0xff] 0.0
        $region56: #{tpu_custom_call.1} parent=35 // pred_fallthru
          _
        %v388 = vld [vmem:[%s359] sm:$0xff]
        %v389 = vld [vmem:[%s359 + $0x8] sm:$0xff]
        %v390 = vld [vmem:[%s359 + $0x10] sm:$0xff]
        %v391 = vld [vmem:[%s359 + $0x18] sm:$0xff]
        %v392 = vld [vmem:[%s359 + $0x20] sm:$0xff]
        %v393 = vld [vmem:[%s359 + $0x28] sm:$0xff]
        %v394 = vld [vmem:[%s359 + $0x30] sm:$0xff]
        %v395 = vld [vmem:[%s359 + $0x38] sm:$0xff]
        %v396 = vld [vmem:[%s359 + $0x40] sm:$0xff]
        %v397 = vld [vmem:[%s359 + $0x48] sm:$0xff]
        %v398 = vld [vmem:[%s359 + $0x50] sm:$0xff]
        %v399 = vld [vmem:[%s359 + $0x58] sm:$0xff]
        %v400 = vld [vmem:[%s359 + $0x60] sm:$0xff]
        %v401 = vld [vmem:[%s359 + $0x68] sm:$0xff]
        %v402 = vld [vmem:[%s359 + $0x70] sm:$0xff]
        %v403 = vld [vmem:[%s359 + $0x78] sm:$0xff]
        %v404 = vld [vmem:[%s293] sm:$0xff]
        %v405 = vld [vmem:[%s293 + $0x8] sm:$0xff]
        %v406 = vld [vmem:[%s293 + $0x10] sm:$0xff]
        %v407 = vld [vmem:[%s293 + $0x18] sm:$0xff]
        %v408 = vld [vmem:[%s293 + $0x20] sm:$0xff]
        %v409 = vld [vmem:[%s293 + $0x28] sm:$0xff]
        %v410 = vld [vmem:[%s293 + $0x30] sm:$0xff]
        %v411 = vld [vmem:[%s293 + $0x38] sm:$0xff]
        %v412 = vld [vmem:[%s293 + $0x40] sm:$0xff]
        %v413 = vld [vmem:[%s293 + $0x48] sm:$0xff]
        %v414 = vld [vmem:[%s293 + $0x50] sm:$0xff]
        %v415 = vld [vmem:[%s293 + $0x58] sm:$0xff]
        %v416 = vld [vmem:[%s293 + $0x60] sm:$0xff]
        %v417 = vld [vmem:[%s293 + $0x68] sm:$0xff]
        %v418 = vld [vmem:[%s293 + $0x70] sm:$0xff]
        %v419 = vld [vmem:[%s293 + $0x78] sm:$0xff]
        %v420 = vld [vmem:[%s293 + $0x80] sm:$0xff]
        %v421 = vld [vmem:[%s293 + $0x88] sm:$0xff]
        %v422 = vld [vmem:[%s293 + $0x90] sm:$0xff]
        %v423 = vld [vmem:[%s293 + $0x98] sm:$0xff]
        %v424 = vld [vmem:[%s293 + $0xa0] sm:$0xff]
        %v425 = vld [vmem:[%s293 + $0xa8] sm:$0xff]
        %v426 = vld [vmem:[%s293 + $0xb0] sm:$0xff]
        %v427 = vld [vmem:[%s293 + $0xb8] sm:$0xff]
        %v428 = vld [vmem:[%s293 + $0xc0] sm:$0xff]
        %v429 = vld [vmem:[%s293 + $0xc8] sm:$0xff]
        %v430 = vld [vmem:[%s293 + $0xd0] sm:$0xff]
        %v431 = vld [vmem:[%s293 + $0xd8] sm:$0xff]
        %v432 = vld [vmem:[%s293 + $0xe0] sm:$0xff]
        %v433 = vld [vmem:[%s293 + $0xe8] sm:$0xff]
        %v434 = vld [vmem:[%s293 + $0xf0] sm:$0xff]
        %v435 = vld [vmem:[%s293 + $0xf8] sm:$0xff]
        %v436 = vld [vmem:[%s293 + $0x100] sm:$0xff]
        %v437 = vld [vmem:[%s293 + $0x108] sm:$0xff]
        %v438 = vld [vmem:[%s293 + $0x110] sm:$0xff]
        %v439 = vld [vmem:[%s293 + $0x118] sm:$0xff]
        %v440 = vld [vmem:[%s293 + $0x120] sm:$0xff]
        %v441 = vld [vmem:[%s293 + $0x128] sm:$0xff]
        %v442 = vld [vmem:[%s293 + $0x130] sm:$0xff]
        %v443 = vld [vmem:[%s293 + $0x138] sm:$0xff]
        %v444 = vld [vmem:[%s293 + $0x140] sm:$0xff]
        %v445 = vld [vmem:[%s293 + $0x148] sm:$0xff]
        %v446 = vld [vmem:[%s293 + $0x150] sm:$0xff]
        %v447 = vld [vmem:[%s293 + $0x158] sm:$0xff]
        %v448 = vld [vmem:[%s293 + $0x160] sm:$0xff]
        %v449 = vld [vmem:[%s293 + $0x168] sm:$0xff]
        %v450 = vld [vmem:[%s293 + $0x170] sm:$0xff]
        %v451 = vld [vmem:[%s293 + $0x178] sm:$0xff]
        %v452 = vld [vmem:[%s293 + $0x180] sm:$0xff]
        %v453 = vld [vmem:[%s293 + $0x188] sm:$0xff]
        %v454 = vld [vmem:[%s293 + $0x190] sm:$0xff]
        %v455 = vld [vmem:[%s293 + $0x198] sm:$0xff]
        %v456 = vld [vmem:[%s293 + $0x1a0] sm:$0xff]
        %v457 = vld [vmem:[%s293 + $0x1a8] sm:$0xff]
        %v458 = vld [vmem:[%s293 + $0x1b0] sm:$0xff]
        %v459 = vld [vmem:[%s293 + $0x1b8] sm:$0xff]
        %v460 = vld [vmem:[%s293 + $0x1c0] sm:$0xff]
        %v461 = vld [vmem:[%s293 + $0x1c8] sm:$0xff]
        %v462 = vld [vmem:[%s293 + $0x1d0] sm:$0xff]
        %v463 = vld [vmem:[%s293 + $0x1d8] sm:$0xff]
        %v464 = vld [vmem:[%s293 + $0x1e0] sm:$0xff]
        %v465 = vld [vmem:[%s293 + $0x1e8] sm:$0xff]
        %v466 = vld [vmem:[%s293 + $0x1f0] sm:$0xff]
        %v467 = vld [vmem:[%s293 + $0x1f8] sm:$0xff]
        %v468 = vld [vmem:[%s302] sm:$0xff]
        %v469 = vld [vmem:[%s302 + $0x8] sm:$0xff]
        %v470 = vld [vmem:[%s302 + $0x10] sm:$0xff]
        %v471 = vld [vmem:[%s302 + $0x18] sm:$0xff]
        %v472 = vld [vmem:[%s302 + $0x20] sm:$0xff]
        %v473 = vld [vmem:[%s302 + $0x28] sm:$0xff]
        %v474 = vld [vmem:[%s302 + $0x30] sm:$0xff]
        %v475 = vld [vmem:[%s302 + $0x38] sm:$0xff]
        %v476 = vld [vmem:[%s302 + $0x40] sm:$0xff]
        %v477 = vld [vmem:[%s302 + $0x48] sm:$0xff]
        %v478 = vld [vmem:[%s302 + $0x50] sm:$0xff]
        %v479 = vld [vmem:[%s302 + $0x58] sm:$0xff]
        %v480 = vld [vmem:[%s302 + $0x60] sm:$0xff]
        %v481 = vld [vmem:[%s302 + $0x68] sm:$0xff]
        %v482 = vld [vmem:[%s302 + $0x70] sm:$0xff]
        %v483 = vld [vmem:[%s302 + $0x78] sm:$0xff]
        %v484 = vld [vmem:[%s302 + $0x80] sm:$0xff]
        %v485 = vld [vmem:[%s302 + $0x88] sm:$0xff]
        %v486 = vld [vmem:[%s302 + $0x90] sm:$0xff]
        %v487 = vld [vmem:[%s302 + $0x98] sm:$0xff]
        %v488 = vld [vmem:[%s302 + $0xa0] sm:$0xff]
        %v489 = vld [vmem:[%s302 + $0xa8] sm:$0xff]
        %v490 = vld [vmem:[%s302 + $0xb0] sm:$0xff]
        %v491 = vld [vmem:[%s302 + $0xb8] sm:$0xff]
        %v492 = vld [vmem:[%s302 + $0xc0] sm:$0xff]
        %v493 = vld [vmem:[%s302 + $0xc8] sm:$0xff]
        %v494 = vld [vmem:[%s302 + $0xd0] sm:$0xff]
        %v495 = vld [vmem:[%s302 + $0xd8] sm:$0xff]
        %v496 = vld [vmem:[%s302 + $0xe0] sm:$0xff]
        %v497 = vld [vmem:[%s302 + $0xe8] sm:$0xff]
        %v498 = vld [vmem:[%s302 + $0xf0] sm:$0xff]
        %v499 = vld [vmem:[%s302 + $0xf8] sm:$0xff]
        %v500 = vld [vmem:[%s302 + $0x100] sm:$0xff]
        %v501 = vld [vmem:[%s302 + $0x108] sm:$0xff]
        %v502 = vld [vmem:[%s302 + $0x110] sm:$0xff]
        %v503 = vld [vmem:[%s302 + $0x118] sm:$0xff]
        %v504 = vld [vmem:[%s302 + $0x120] sm:$0xff]
        %v505 = vld [vmem:[%s302 + $0x128] sm:$0xff]
        %v506 = vld [vmem:[%s302 + $0x130] sm:$0xff]
        %v507 = vld [vmem:[%s302 + $0x138] sm:$0xff]
        %v508 = vld [vmem:[%s302 + $0x140] sm:$0xff]
        %v509 = vld [vmem:[%s302 + $0x148] sm:$0xff]
        %v510 = vld [vmem:[%s302 + $0x150] sm:$0xff]
        %v511 = vld [vmem:[%s302 + $0x158] sm:$0xff]
        %v512 = vld [vmem:[%s302 + $0x160] sm:$0xff]
        %v513 = vld [vmem:[%s302 + $0x168] sm:$0xff]
        %v514 = vld [vmem:[%s302 + $0x170] sm:$0xff]
        %v515 = vld [vmem:[%s302 + $0x178] sm:$0xff]
        %v516 = vld [vmem:[%s302 + $0x180] sm:$0xff]
        %v517 = vld [vmem:[%s302 + $0x188] sm:$0xff]
        %v518 = vld [vmem:[%s302 + $0x190] sm:$0xff]
        %v519 = vld [vmem:[%s302 + $0x198] sm:$0xff]
        %v520 = vld [vmem:[%s302 + $0x1a0] sm:$0xff]
        %v521 = vld [vmem:[%s302 + $0x1a8] sm:$0xff]
        %v522 = vld [vmem:[%s302 + $0x1b0] sm:$0xff]
        %v523 = vld [vmem:[%s302 + $0x1b8] sm:$0xff]
        %v524 = vld [vmem:[%s302 + $0x1c0] sm:$0xff]
        %v525 = vld [vmem:[%s302 + $0x1c8] sm:$0xff]
        %v526 = vld [vmem:[%s302 + $0x1d0] sm:$0xff]
        %v527 = vld [vmem:[%s302 + $0x1d8] sm:$0xff]
        %v528 = vld [vmem:[%s302 + $0x1e0] sm:$0xff]
        %v529 = vld [vmem:[%s302 + $0x1e8] sm:$0xff]
        %v530 = vld [vmem:[%s302 + $0x1f0] sm:$0xff]
        %v531 = vld [vmem:[%s302 + $0x1f8] sm:$0xff]
        %v532 = vld [vmem:[%s302 + $0x200] sm:$0xff]
        %v533 = vld [vmem:[%s302 + $0x208] sm:$0xff]
        %v534 = vld [vmem:[%s302 + $0x210] sm:$0xff]
        %v535 = vld [vmem:[%s302 + $0x218] sm:$0xff]
        %v536 = vld [vmem:[%s302 + $0x220] sm:$0xff]
        %v537 = vld [vmem:[%s302 + $0x228] sm:$0xff]
        %v538 = vld [vmem:[%s302 + $0x230] sm:$0xff]
        %v539 = vld [vmem:[%s302 + $0x238] sm:$0xff]
        %v540 = vld [vmem:[%s302 + $0x240] sm:$0xff]
        %v541 = vld [vmem:[%s302 + $0x248] sm:$0xff]
        %v542 = vld [vmem:[%s302 + $0x250] sm:$0xff]
        %v543 = vld [vmem:[%s302 + $0x258] sm:$0xff]
        %v544 = vld [vmem:[%s302 + $0x260] sm:$0xff]
        %v545 = vld [vmem:[%s302 + $0x268] sm:$0xff]
        %v546 = vld [vmem:[%s302 + $0x270] sm:$0xff]
        %v547 = vld [vmem:[%s302 + $0x278] sm:$0xff]
        %v548 = vld [vmem:[%s302 + $0x280] sm:$0xff]
        %v549 = vld [vmem:[%s302 + $0x288] sm:$0xff]
        %v550 = vld [vmem:[%s302 + $0x290] sm:$0xff]
        %v551 = vld [vmem:[%s302 + $0x298] sm:$0xff]
        %v552 = vld [vmem:[%s302 + $0x2a0] sm:$0xff]
        %v553 = vld [vmem:[%s302 + $0x2a8] sm:$0xff]
        %v554 = vld [vmem:[%s302 + $0x2b0] sm:$0xff]
        %v555 = vld [vmem:[%s302 + $0x2b8] sm:$0xff]
        %v556 = vld [vmem:[%s302 + $0x2c0] sm:$0xff]
        %v557 = vld [vmem:[%s302 + $0x2c8] sm:$0xff]
        %v558 = vld [vmem:[%s302 + $0x2d0] sm:$0xff]
        %v559 = vld [vmem:[%s302 + $0x2d8] sm:$0xff]
        %v560 = vld [vmem:[%s302 + $0x2e0] sm:$0xff]
        %v561 = vld [vmem:[%s302 + $0x2e8] sm:$0xff]
        %v562 = vld [vmem:[%s302 + $0x2f0] sm:$0xff]
        %v563 = vld [vmem:[%s302 + $0x2f8] sm:$0xff]
        %v564 = vld [vmem:[%s302 + $0x300] sm:$0xff]
        %v565 = vld [vmem:[%s302 + $0x308] sm:$0xff]
        %v566 = vld [vmem:[%s302 + $0x310] sm:$0xff]
        %v567 = vld [vmem:[%s302 + $0x318] sm:$0xff]
        %v568 = vld [vmem:[%s302 + $0x320] sm:$0xff]
        %v569 = vld [vmem:[%s302 + $0x328] sm:$0xff]
        %v570 = vld [vmem:[%s302 + $0x330] sm:$0xff]
        %v571 = vld [vmem:[%s302 + $0x338] sm:$0xff]
        %v572 = vld [vmem:[%s302 + $0x340] sm:$0xff]
        %v573 = vld [vmem:[%s302 + $0x348] sm:$0xff]
        %v574 = vld [vmem:[%s302 + $0x350] sm:$0xff]
        %v575 = vld [vmem:[%s302 + $0x358] sm:$0xff]
        %v576 = vld [vmem:[%s302 + $0x360] sm:$0xff]
        %v577 = vld [vmem:[%s302 + $0x368] sm:$0xff]
        %v578 = vld [vmem:[%s302 + $0x370] sm:$0xff]
        %v579 = vld [vmem:[%s302 + $0x378] sm:$0xff]
        %v580 = vld [vmem:[%s302 + $0x380] sm:$0xff]
        %v581 = vld [vmem:[%s302 + $0x388] sm:$0xff]
        %v582 = vld [vmem:[%s302 + $0x390] sm:$0xff]
        %v583 = vld [vmem:[%s302 + $0x398] sm:$0xff]
        %v584 = vld [vmem:[%s302 + $0x3a0] sm:$0xff]
        %v585 = vld [vmem:[%s302 + $0x3a8] sm:$0xff]
        %v586 = vld [vmem:[%s302 + $0x3b0] sm:$0xff]
        %v587 = vld [vmem:[%s302 + $0x3b8] sm:$0xff]
        %v588 = vld [vmem:[%s302 + $0x3c0] sm:$0xff]
        %v589 = vld [vmem:[%s302 + $0x3c8] sm:$0xff]
        %v590 = vld [vmem:[%s302 + $0x3d0] sm:$0xff]
        %v591 = vld [vmem:[%s302 + $0x3d8] sm:$0xff]
        %v592 = vld [vmem:[%s302 + $0x3e0] sm:$0xff]
        %v593 = vld [vmem:[%s302 + $0x3e8] sm:$0xff]
        %v594 = vld [vmem:[%s302 + $0x3f0] sm:$0xff]
        %v595 = vld [vmem:[%s302 + $0x3f8] sm:$0xff]
        %v596 = vld [vmem:[%s302 + $0x400] sm:$0xff]
        %v597 = vld [vmem:[%s302 + $0x408] sm:$0xff]
        %v598 = vld [vmem:[%s302 + $0x410] sm:$0xff]
        %v599 = vld [vmem:[%s302 + $0x418] sm:$0xff]
        %v600 = vld [vmem:[%s302 + $0x420] sm:$0xff]
        %v601 = vld [vmem:[%s302 + $0x428] sm:$0xff]
        %v602 = vld [vmem:[%s302 + $0x430] sm:$0xff]
        %v603 = vld [vmem:[%s302 + $0x438] sm:$0xff]
        %v604 = vld [vmem:[%s302 + $0x440] sm:$0xff]
        %v605 = vld [vmem:[%s302 + $0x448] sm:$0xff]
        %v606 = vld [vmem:[%s302 + $0x450] sm:$0xff]
        %v607 = vld [vmem:[%s302 + $0x458] sm:$0xff]
        %v608 = vld [vmem:[%s302 + $0x460] sm:$0xff]
        %v609 = vld [vmem:[%s302 + $0x468] sm:$0xff]
        %v610 = vld [vmem:[%s302 + $0x470] sm:$0xff]
        %v611 = vld [vmem:[%s302 + $0x478] sm:$0xff]
        %v612 = vld [vmem:[%s302 + $0x480] sm:$0xff]
        %v613 = vld [vmem:[%s302 + $0x488] sm:$0xff]
        %v614 = vld [vmem:[%s302 + $0x490] sm:$0xff]
        %v615 = vld [vmem:[%s302 + $0x498] sm:$0xff]
        %v616 = vld [vmem:[%s302 + $0x4a0] sm:$0xff]
        %v617 = vld [vmem:[%s302 + $0x4a8] sm:$0xff]
        %v618 = vld [vmem:[%s302 + $0x4b0] sm:$0xff]
        %v619 = vld [vmem:[%s302 + $0x4b8] sm:$0xff]
        %v620 = vld [vmem:[%s302 + $0x4c0] sm:$0xff]
        %v621 = vld [vmem:[%s302 + $0x4c8] sm:$0xff]
        %v622 = vld [vmem:[%s302 + $0x4d0] sm:$0xff]
        %v623 = vld [vmem:[%s302 + $0x4d8] sm:$0xff]
        %v624 = vld [vmem:[%s302 + $0x4e0] sm:$0xff]
        %v625 = vld [vmem:[%s302 + $0x4e8] sm:$0xff]
        %v626 = vld [vmem:[%s302 + $0x4f0] sm:$0xff]
        %v627 = vld [vmem:[%s302 + $0x4f8] sm:$0xff]
        %v628 = vld [vmem:[%s302 + $0x500] sm:$0xff]
        %v629 = vld [vmem:[%s302 + $0x508] sm:$0xff]
        %v630 = vld [vmem:[%s302 + $0x510] sm:$0xff]
        %v631 = vld [vmem:[%s302 + $0x518] sm:$0xff]
        %v632 = vld [vmem:[%s302 + $0x520] sm:$0xff]
        %v633 = vld [vmem:[%s302 + $0x528] sm:$0xff]
        %v634 = vld [vmem:[%s302 + $0x530] sm:$0xff]
        %v635 = vld [vmem:[%s302 + $0x538] sm:$0xff]
        %v636 = vld [vmem:[%s302 + $0x540] sm:$0xff]
        %v637 = vld [vmem:[%s302 + $0x548] sm:$0xff]
        %v638 = vld [vmem:[%s302 + $0x550] sm:$0xff]
        %v639 = vld [vmem:[%s302 + $0x558] sm:$0xff]
        %v640 = vld [vmem:[%s302 + $0x560] sm:$0xff]
        %v641 = vld [vmem:[%s302 + $0x568] sm:$0xff]
        %v642 = vld [vmem:[%s302 + $0x570] sm:$0xff]
        %v643 = vld [vmem:[%s302 + $0x578] sm:$0xff]
        %v644 = vld [vmem:[%s302 + $0x580] sm:$0xff]
        %v645 = vld [vmem:[%s302 + $0x588] sm:$0xff]
        %v646 = vld [vmem:[%s302 + $0x590] sm:$0xff]
        %v647 = vld [vmem:[%s302 + $0x598] sm:$0xff]
        %v648 = vld [vmem:[%s302 + $0x5a0] sm:$0xff]
        %v649 = vld [vmem:[%s302 + $0x5a8] sm:$0xff]
        %v650 = vld [vmem:[%s302 + $0x5b0] sm:$0xff]
        %v651 = vld [vmem:[%s302 + $0x5b8] sm:$0xff]
        %v652 = vld [vmem:[%s302 + $0x5c0] sm:$0xff]
        %v653 = vld [vmem:[%s302 + $0x5c8] sm:$0xff]
        %v654 = vld [vmem:[%s302 + $0x5d0] sm:$0xff]
        %v655 = vld [vmem:[%s302 + $0x5d8] sm:$0xff]
        %v656 = vld [vmem:[%s302 + $0x5e0] sm:$0xff]
        %v657 = vld [vmem:[%s302 + $0x5e8] sm:$0xff]
        %v658 = vld [vmem:[%s302 + $0x5f0] sm:$0xff]
        %v659 = vld [vmem:[%s302 + $0x5f8] sm:$0xff]
        %v660 = vld [vmem:[%s302 + $0x600] sm:$0xff]
        %v661 = vld [vmem:[%s302 + $0x608] sm:$0xff]
        %v662 = vld [vmem:[%s302 + $0x610] sm:$0xff]
        %v663 = vld [vmem:[%s302 + $0x618] sm:$0xff]
        %v664 = vld [vmem:[%s302 + $0x620] sm:$0xff]
        %v665 = vld [vmem:[%s302 + $0x628] sm:$0xff]
        %v666 = vld [vmem:[%s302 + $0x630] sm:$0xff]
        %v667 = vld [vmem:[%s302 + $0x638] sm:$0xff]
        %v668 = vld [vmem:[%s302 + $0x640] sm:$0xff]
        %v669 = vld [vmem:[%s302 + $0x648] sm:$0xff]
        %v670 = vld [vmem:[%s302 + $0x650] sm:$0xff]
        %v671 = vld [vmem:[%s302 + $0x658] sm:$0xff]
        %v672 = vld [vmem:[%s302 + $0x660] sm:$0xff]
        %v673 = vld [vmem:[%s302 + $0x668] sm:$0xff]
        %v674 = vld [vmem:[%s302 + $0x670] sm:$0xff]
        %v675 = vld [vmem:[%s302 + $0x678] sm:$0xff]
        %v676 = vld [vmem:[%s302 + $0x680] sm:$0xff]
        %v677 = vld [vmem:[%s302 + $0x688] sm:$0xff]
        %v678 = vld [vmem:[%s302 + $0x690] sm:$0xff]
        %v679 = vld [vmem:[%s302 + $0x698] sm:$0xff]
        %v680 = vld [vmem:[%s302 + $0x6a0] sm:$0xff]
        %v681 = vld [vmem:[%s302 + $0x6a8] sm:$0xff]
        %v682 = vld [vmem:[%s302 + $0x6b0] sm:$0xff]
        %v683 = vld [vmem:[%s302 + $0x6b8] sm:$0xff]
        %v684 = vld [vmem:[%s302 + $0x6c0] sm:$0xff]
        %v685 = vld [vmem:[%s302 + $0x6c8] sm:$0xff]
        %v686 = vld [vmem:[%s302 + $0x6d0] sm:$0xff]
        %v687 = vld [vmem:[%s302 + $0x6d8] sm:$0xff]
        %v688 = vld [vmem:[%s302 + $0x6e0] sm:$0xff]
        %v689 = vld [vmem:[%s302 + $0x6e8] sm:$0xff]
        %v690 = vld [vmem:[%s302 + $0x6f0] sm:$0xff]
        %v691 = vld [vmem:[%s302 + $0x6f8] sm:$0xff]
        %v692 = vld [vmem:[%s302 + $0x700] sm:$0xff]
        %v693 = vld [vmem:[%s302 + $0x708] sm:$0xff]
        %v694 = vld [vmem:[%s302 + $0x710] sm:$0xff]
        %v695 = vld [vmem:[%s302 + $0x718] sm:$0xff]
        %v696 = vld [vmem:[%s302 + $0x720] sm:$0xff]
        %v697 = vld [vmem:[%s302 + $0x728] sm:$0xff]
        %v698 = vld [vmem:[%s302 + $0x730] sm:$0xff]
        %v699 = vld [vmem:[%s302 + $0x738] sm:$0xff]
        %v700 = vld [vmem:[%s302 + $0x740] sm:$0xff]
        %v701 = vld [vmem:[%s302 + $0x748] sm:$0xff]
        %v702 = vld [vmem:[%s302 + $0x750] sm:$0xff]
        %v703 = vld [vmem:[%s302 + $0x758] sm:$0xff]
        %v704 = vld [vmem:[%s302 + $0x760] sm:$0xff]
        %v705 = vld [vmem:[%s302 + $0x768] sm:$0xff]
        %v706 = vld [vmem:[%s302 + $0x770] sm:$0xff]
        %v707 = vld [vmem:[%s302 + $0x778] sm:$0xff]
        %v708 = vld [vmem:[%s302 + $0x780] sm:$0xff]
        %v709 = vld [vmem:[%s302 + $0x788] sm:$0xff]
        %v710 = vld [vmem:[%s302 + $0x790] sm:$0xff]
        %v711 = vld [vmem:[%s302 + $0x798] sm:$0xff]
        %v712 = vld [vmem:[%s302 + $0x7a0] sm:$0xff]
        %v713 = vld [vmem:[%s302 + $0x7a8] sm:$0xff]
        %v714 = vld [vmem:[%s302 + $0x7b0] sm:$0xff]
        %v715 = vld [vmem:[%s302 + $0x7b8] sm:$0xff]
        %v716 = vld [vmem:[%s302 + $0x7c0] sm:$0xff]
        %v717 = vld [vmem:[%s302 + $0x7c8] sm:$0xff]
        %v718 = vld [vmem:[%s302 + $0x7d0] sm:$0xff]
        %v719 = vld [vmem:[%s302 + $0x7d8] sm:$0xff]
        %v720 = vld [vmem:[%s302 + $0x7e0] sm:$0xff]
        %v721 = vld [vmem:[%s302 + $0x7e8] sm:$0xff]
        %v722 = vld [vmem:[%s302 + $0x7f0] sm:$0xff]
        %v723 = vld [vmem:[%s302 + $0x7f8] sm:$0xff]
        %v788 = vunpack.c.l.b16 %v404
        %v789 = vunpack.c.h.b16 %v404
        %v790 = vunpack.c.l.b16 %v405
        %v791 = vunpack.c.h.b16 %v405
        %v792 = vunpack.c.l.b16 %v406
        %v793 = vunpack.c.h.b16 %v406
        %v794 = vunpack.c.l.b16 %v407
        %v795 = vunpack.c.h.b16 %v407
        %v796 = vunpack.c.l.b16 %v408
        %v797 = vunpack.c.h.b16 %v408
        %v798 = vunpack.c.l.b16 %v409
        %v799 = vunpack.c.h.b16 %v409
        %v800 = vunpack.c.l.b16 %v410
        %v801 = vunpack.c.h.b16 %v410
        %v802 = vunpack.c.l.b16 %v411
        %v803 = vunpack.c.h.b16 %v411
        %v804 = vunpack.c.l.b16 %v412
        %v805 = vunpack.c.h.b16 %v412
        %v806 = vunpack.c.l.b16 %v413
        %v807 = vunpack.c.h.b16 %v413
        %v808 = vunpack.c.l.b16 %v414
        %v809 = vunpack.c.h.b16 %v414
        %v810 = vunpack.c.l.b16 %v415
        %v811 = vunpack.c.h.b16 %v415
        %v812 = vunpack.c.l.b16 %v416
        %v813 = vunpack.c.h.b16 %v416
        %v814 = vunpack.c.l.b16 %v417
        %v815 = vunpack.c.h.b16 %v417
        %v816 = vunpack.c.l.b16 %v418
        %v817 = vunpack.c.h.b16 %v418
        %v818 = vunpack.c.l.b16 %v419
        %v819 = vunpack.c.h.b16 %v419
        %v820 = vunpack.c.l.b16 %v420
        %v821 = vunpack.c.h.b16 %v420
        %v822 = vunpack.c.l.b16 %v421
        %v823 = vunpack.c.h.b16 %v421
        %v824 = vunpack.c.l.b16 %v422
        %v825 = vunpack.c.h.b16 %v422
        %v826 = vunpack.c.l.b16 %v423
        %v827 = vunpack.c.h.b16 %v423
        %v828 = vunpack.c.l.b16 %v424
        %v829 = vunpack.c.h.b16 %v424
        %v830 = vunpack.c.l.b16 %v425
        %v831 = vunpack.c.h.b16 %v425
        %v832 = vunpack.c.l.b16 %v426
        %v833 = vunpack.c.h.b16 %v426
        %v834 = vunpack.c.l.b16 %v427
        %v835 = vunpack.c.h.b16 %v427
        %v836 = vunpack.c.l.b16 %v428
        %v837 = vunpack.c.h.b16 %v428
        %v838 = vunpack.c.l.b16 %v429
        %v839 = vunpack.c.h.b16 %v429
        %v840 = vunpack.c.l.b16 %v430
        %v841 = vunpack.c.h.b16 %v430
        %v842 = vunpack.c.l.b16 %v431
        %v843 = vunpack.c.h.b16 %v431
        %v844 = vunpack.c.l.b16 %v432
        %v845 = vunpack.c.h.b16 %v432
        %v846 = vunpack.c.l.b16 %v433
        %v847 = vunpack.c.h.b16 %v433
        %v848 = vunpack.c.l.b16 %v434
        %v849 = vunpack.c.h.b16 %v434
        %v850 = vunpack.c.l.b16 %v435
        %v851 = vunpack.c.h.b16 %v435
        %v852 = vunpack.c.l.b16 %v436
        %v853 = vunpack.c.h.b16 %v436
        %v854 = vunpack.c.l.b16 %v437
        %v855 = vunpack.c.h.b16 %v437
        %v856 = vunpack.c.l.b16 %v438
        %v857 = vunpack.c.h.b16 %v438
        %v858 = vunpack.c.l.b16 %v439
        %v859 = vunpack.c.h.b16 %v439
        %v860 = vunpack.c.l.b16 %v440
        %v861 = vunpack.c.h.b16 %v440
        %v862 = vunpack.c.l.b16 %v441
        %v863 = vunpack.c.h.b16 %v441
        %v864 = vunpack.c.l.b16 %v442
        %v865 = vunpack.c.h.b16 %v442
        %v866 = vunpack.c.l.b16 %v443
        %v867 = vunpack.c.h.b16 %v443
        %v868 = vunpack.c.l.b16 %v444
        %v869 = vunpack.c.h.b16 %v444
        %v870 = vunpack.c.l.b16 %v445
        %v871 = vunpack.c.h.b16 %v445
        %v872 = vunpack.c.l.b16 %v446
        %v873 = vunpack.c.h.b16 %v446
        %v874 = vunpack.c.l.b16 %v447
        %v875 = vunpack.c.h.b16 %v447
        %v876 = vunpack.c.l.b16 %v448
        %v877 = vunpack.c.h.b16 %v448
        %v878 = vunpack.c.l.b16 %v449
        %v879 = vunpack.c.h.b16 %v449
        %v880 = vunpack.c.l.b16 %v450
        %v881 = vunpack.c.h.b16 %v450
        %v882 = vunpack.c.l.b16 %v451
        %v883 = vunpack.c.h.b16 %v451
        %v884 = vunpack.c.l.b16 %v452
        %v885 = vunpack.c.h.b16 %v452
        %v886 = vunpack.c.l.b16 %v453
        %v887 = vunpack.c.h.b16 %v453
        %v888 = vunpack.c.l.b16 %v454
        %v889 = vunpack.c.h.b16 %v454
        %v890 = vunpack.c.l.b16 %v455
        %v891 = vunpack.c.h.b16 %v455
        %v892 = vunpack.c.l.b16 %v456
        %v893 = vunpack.c.h.b16 %v456
        %v894 = vunpack.c.l.b16 %v457
        %v895 = vunpack.c.h.b16 %v457
        %v896 = vunpack.c.l.b16 %v458
        %v897 = vunpack.c.h.b16 %v458
        %v898 = vunpack.c.l.b16 %v459
        %v899 = vunpack.c.h.b16 %v459
        %v900 = vunpack.c.l.b16 %v460
        %v901 = vunpack.c.h.b16 %v460
        %v902 = vunpack.c.l.b16 %v461
        %v903 = vunpack.c.h.b16 %v461
        %v904 = vunpack.c.l.b16 %v462
        %v905 = vunpack.c.h.b16 %v462
        %v906 = vunpack.c.l.b16 %v463
        %v907 = vunpack.c.h.b16 %v463
        %v908 = vunpack.c.l.b16 %v464
        %v909 = vunpack.c.h.b16 %v464
        %v910 = vunpack.c.l.b16 %v465
        %v911 = vunpack.c.h.b16 %v465
        %v912 = vunpack.c.l.b16 %v466
        %v913 = vunpack.c.h.b16 %v466
        %v914 = vunpack.c.l.b16 %v467
        %v915 = vunpack.c.h.b16 %v467
        %v916 = vpack.c.b16 %v804, %v788
        %v917 = vpack.c.b16 %v805, %v789
        %v918 = vpack.c.b16 %v806, %v790
        %v919 = vpack.c.b16 %v807, %v791
        %v920 = vpack.c.b16 %v808, %v792
        %v921 = vpack.c.b16 %v809, %v793
        %v922 = vpack.c.b16 %v810, %v794
        %v923 = vpack.c.b16 %v811, %v795
        %v924 = vpack.c.b16 %v812, %v796
        %v925 = vpack.c.b16 %v813, %v797
        %v926 = vpack.c.b16 %v814, %v798
        %v927 = vpack.c.b16 %v815, %v799
        %v928 = vpack.c.b16 %v816, %v800
        %v929 = vpack.c.b16 %v817, %v801
        %v930 = vpack.c.b16 %v818, %v802
        %v931 = vpack.c.b16 %v819, %v803
        %v932 = vpack.c.b16 %v836, %v820
        %v933 = vpack.c.b16 %v837, %v821
        %v934 = vpack.c.b16 %v838, %v822
        %v935 = vpack.c.b16 %v839, %v823
        %v936 = vpack.c.b16 %v840, %v824
        %v937 = vpack.c.b16 %v841, %v825
        %v938 = vpack.c.b16 %v842, %v826
        %v939 = vpack.c.b16 %v843, %v827
        %v940 = vpack.c.b16 %v844, %v828
        %v941 = vpack.c.b16 %v845, %v829
        %v942 = vpack.c.b16 %v846, %v830
        %v943 = vpack.c.b16 %v847, %v831
        %v944 = vpack.c.b16 %v848, %v832
        %v945 = vpack.c.b16 %v849, %v833
        %v946 = vpack.c.b16 %v850, %v834
        %v947 = vpack.c.b16 %v851, %v835
        %v948 = vpack.c.b16 %v868, %v852
        %v949 = vpack.c.b16 %v869, %v853
        %v950 = vpack.c.b16 %v870, %v854
        %v951 = vpack.c.b16 %v871, %v855
        %v952 = vpack.c.b16 %v872, %v856
        %v953 = vpack.c.b16 %v873, %v857
        %v954 = vpack.c.b16 %v874, %v858
        %v955 = vpack.c.b16 %v875, %v859
        %v956 = vpack.c.b16 %v876, %v860
        %v957 = vpack.c.b16 %v877, %v861
        %v958 = vpack.c.b16 %v878, %v862
        %v959 = vpack.c.b16 %v879, %v863
        %v960 = vpack.c.b16 %v880, %v864
        %v961 = vpack.c.b16 %v881, %v865
        %v962 = vpack.c.b16 %v882, %v866
        %v963 = vpack.c.b16 %v883, %v867
        %v964 = vpack.c.b16 %v900, %v884
        %v965 = vpack.c.b16 %v901, %v885
        %v966 = vpack.c.b16 %v902, %v886
        %v967 = vpack.c.b16 %v903, %v887
        %v968 = vpack.c.b16 %v904, %v888
        %v969 = vpack.c.b16 %v905, %v889
        %v970 = vpack.c.b16 %v906, %v890
        %v971 = vpack.c.b16 %v907, %v891
        %v972 = vpack.c.b16 %v908, %v892
        %v973 = vpack.c.b16 %v909, %v893
        %v974 = vpack.c.b16 %v910, %v894
        %v975 = vpack.c.b16 %v911, %v895
        %v976 = vpack.c.b16 %v912, %v896
        %v977 = vpack.c.b16 %v913, %v897
        %v978 = vpack.c.b16 %v914, %v898
        %v979 = vpack.c.b16 %v915, %v899
        %v1300 = vunpack.c.l.b16 %v468
        %v1301 = vunpack.c.h.b16 %v468
        %v1302 = vunpack.c.l.b16 %v469
        %v1303 = vunpack.c.h.b16 %v469
        %v1304 = vunpack.c.l.b16 %v470
        %v1305 = vunpack.c.h.b16 %v470
        %v1306 = vunpack.c.l.b16 %v471
        %v1307 = vunpack.c.h.b16 %v471
        %v1308 = vunpack.c.l.b16 %v472
        %v1309 = vunpack.c.h.b16 %v472
        %v1310 = vunpack.c.l.b16 %v473
        %v1311 = vunpack.c.h.b16 %v473
        %v1312 = vunpack.c.l.b16 %v474
        %v1313 = vunpack.c.h.b16 %v474
        %v1314 = vunpack.c.l.b16 %v475
        %v1315 = vunpack.c.h.b16 %v475
        %v1316 = vunpack.c.l.b16 %v476
        %v1317 = vunpack.c.h.b16 %v476
        %v1318 = vunpack.c.l.b16 %v477
        %v1319 = vunpack.c.h.b16 %v477
        %v1320 = vunpack.c.l.b16 %v478
        %v1321 = vunpack.c.h.b16 %v478
        %v1322 = vunpack.c.l.b16 %v479
        %v1323 = vunpack.c.h.b16 %v479
        %v1324 = vunpack.c.l.b16 %v480
        %v1325 = vunpack.c.h.b16 %v480
        %v1326 = vunpack.c.l.b16 %v481
        %v1327 = vunpack.c.h.b16 %v481
        %v1328 = vunpack.c.l.b16 %v482
        %v1329 = vunpack.c.h.b16 %v482
        %v1330 = vunpack.c.l.b16 %v483
        %v1331 = vunpack.c.h.b16 %v483
        %v1332 = vunpack.c.l.b16 %v484
        %v1333 = vunpack.c.h.b16 %v484
        %v1334 = vunpack.c.l.b16 %v485
        %v1335 = vunpack.c.h.b16 %v485
        %v1336 = vunpack.c.l.b16 %v486
        %v1337 = vunpack.c.h.b16 %v486
        %v1338 = vunpack.c.l.b16 %v487
        %v1339 = vunpack.c.h.b16 %v487
        %v1340 = vunpack.c.l.b16 %v488
        %v1341 = vunpack.c.h.b16 %v488
        %v1342 = vunpack.c.l.b16 %v489
        %v1343 = vunpack.c.h.b16 %v489
        %v1344 = vunpack.c.l.b16 %v490
        %v1345 = vunpack.c.h.b16 %v490
        %v1346 = vunpack.c.l.b16 %v491
        %v1347 = vunpack.c.h.b16 %v491
        %v1348 = vunpack.c.l.b16 %v492
        %v1349 = vunpack.c.h.b16 %v492
        %v1350 = vunpack.c.l.b16 %v493
        %v1351 = vunpack.c.h.b16 %v493
        %v1352 = vunpack.c.l.b16 %v494
        %v1353 = vunpack.c.h.b16 %v494
        %v1354 = vunpack.c.l.b16 %v495
        %v1355 = vunpack.c.h.b16 %v495
        %v1356 = vunpack.c.l.b16 %v496
        %v1357 = vunpack.c.h.b16 %v496
        %v1358 = vunpack.c.l.b16 %v497
        %v1359 = vunpack.c.h.b16 %v497
        %v1360 = vunpack.c.l.b16 %v498
        %v1361 = vunpack.c.h.b16 %v498
        %v1362 = vunpack.c.l.b16 %v499
        %v1363 = vunpack.c.h.b16 %v499
        %v1364 = vunpack.c.l.b16 %v500
        %v1365 = vunpack.c.h.b16 %v500
        %v1366 = vunpack.c.l.b16 %v501
        %v1367 = vunpack.c.h.b16 %v501
        %v1368 = vunpack.c.l.b16 %v502
        %v1369 = vunpack.c.h.b16 %v502
        %v1370 = vunpack.c.l.b16 %v503
        %v1371 = vunpack.c.h.b16 %v503
        %v1372 = vunpack.c.l.b16 %v504
        %v1373 = vunpack.c.h.b16 %v504
        %v1374 = vunpack.c.l.b16 %v505
        %v1375 = vunpack.c.h.b16 %v505
        %v1376 = vunpack.c.l.b16 %v506
        %v1377 = vunpack.c.h.b16 %v506
        %v1378 = vunpack.c.l.b16 %v507
        %v1379 = vunpack.c.h.b16 %v507
        %v1380 = vunpack.c.l.b16 %v508
        %v1381 = vunpack.c.h.b16 %v508
        %v1382 = vunpack.c.l.b16 %v509
        %v1383 = vunpack.c.h.b16 %v509
        %v1384 = vunpack.c.l.b16 %v510
        %v1385 = vunpack.c.h.b16 %v510
        %v1386 = vunpack.c.l.b16 %v511
        %v1387 = vunpack.c.h.b16 %v511
        %v1388 = vunpack.c.l.b16 %v512
        %v1389 = vunpack.c.h.b16 %v512
        %v1390 = vunpack.c.l.b16 %v513
        %v1391 = vunpack.c.h.b16 %v513
        %v1392 = vunpack.c.l.b16 %v514
        %v1393 = vunpack.c.h.b16 %v514
        %v1394 = vunpack.c.l.b16 %v515
        %v1395 = vunpack.c.h.b16 %v515
        %v1396 = vunpack.c.l.b16 %v516
        %v1397 = vunpack.c.h.b16 %v516
        %v1398 = vunpack.c.l.b16 %v517
        %v1399 = vunpack.c.h.b16 %v517
        %v1400 = vunpack.c.l.b16 %v518
        %v1401 = vunpack.c.h.b16 %v518
        %v1402 = vunpack.c.l.b16 %v519
        %v1403 = vunpack.c.h.b16 %v519
        %v1404 = vunpack.c.l.b16 %v520
        %v1405 = vunpack.c.h.b16 %v520
        %v1406 = vunpack.c.l.b16 %v521
        %v1407 = vunpack.c.h.b16 %v521
        %v1408 = vunpack.c.l.b16 %v522
        %v1409 = vunpack.c.h.b16 %v522
        %v1410 = vunpack.c.l.b16 %v523
        %v1411 = vunpack.c.h.b16 %v523
        %v1412 = vunpack.c.l.b16 %v524
        %v1413 = vunpack.c.h.b16 %v524
        %v1414 = vunpack.c.l.b16 %v525
        %v1415 = vunpack.c.h.b16 %v525
        %v1416 = vunpack.c.l.b16 %v526
        %v1417 = vunpack.c.h.b16 %v526
        %v1418 = vunpack.c.l.b16 %v527
        %v1419 = vunpack.c.h.b16 %v527
        %v1420 = vunpack.c.l.b16 %v528
        %v1421 = vunpack.c.h.b16 %v528
        %v1422 = vunpack.c.l.b16 %v529
        %v1423 = vunpack.c.h.b16 %v529
        %v1424 = vunpack.c.l.b16 %v530
        %v1425 = vunpack.c.h.b16 %v530
        %v1426 = vunpack.c.l.b16 %v531
        %v1427 = vunpack.c.h.b16 %v531
        %v1428 = vunpack.c.l.b16 %v532
        %v1429 = vunpack.c.h.b16 %v532
        %v1430 = vunpack.c.l.b16 %v533
        %v1431 = vunpack.c.h.b16 %v533
        %v1432 = vunpack.c.l.b16 %v534
        %v1433 = vunpack.c.h.b16 %v534
        %v1434 = vunpack.c.l.b16 %v535
        %v1435 = vunpack.c.h.b16 %v535
        %v1436 = vunpack.c.l.b16 %v536
        %v1437 = vunpack.c.h.b16 %v536
        %v1438 = vunpack.c.l.b16 %v537
        %v1439 = vunpack.c.h.b16 %v537
        %v1440 = vunpack.c.l.b16 %v538
        %v1441 = vunpack.c.h.b16 %v538
        %v1442 = vunpack.c.l.b16 %v539
        %v1443 = vunpack.c.h.b16 %v539
        %v1444 = vunpack.c.l.b16 %v540
        %v1445 = vunpack.c.h.b16 %v540
        %v1446 = vunpack.c.l.b16 %v541
        %v1447 = vunpack.c.h.b16 %v541
        %v1448 = vunpack.c.l.b16 %v542
        %v1449 = vunpack.c.h.b16 %v542
        %v1450 = vunpack.c.l.b16 %v543
        %v1451 = vunpack.c.h.b16 %v543
        %v1452 = vunpack.c.l.b16 %v544
        %v1453 = vunpack.c.h.b16 %v544
        %v1454 = vunpack.c.l.b16 %v545
        %v1455 = vunpack.c.h.b16 %v545
        %v1456 = vunpack.c.l.b16 %v546
        %v1457 = vunpack.c.h.b16 %v546
        %v1458 = vunpack.c.l.b16 %v547
        %v1459 = vunpack.c.h.b16 %v547
        %v1460 = vunpack.c.l.b16 %v548
        %v1461 = vunpack.c.h.b16 %v548
        %v1462 = vunpack.c.l.b16 %v549
        %v1463 = vunpack.c.h.b16 %v549
        %v1464 = vunpack.c.l.b16 %v550
        %v1465 = vunpack.c.h.b16 %v550
        %v1466 = vunpack.c.l.b16 %v551
        %v1467 = vunpack.c.h.b16 %v551
        %v1468 = vunpack.c.l.b16 %v552
        %v1469 = vunpack.c.h.b16 %v552
        %v1470 = vunpack.c.l.b16 %v553
        %v1471 = vunpack.c.h.b16 %v553
        %v1472 = vunpack.c.l.b16 %v554
        %v1473 = vunpack.c.h.b16 %v554
        %v1474 = vunpack.c.l.b16 %v555
        %v1475 = vunpack.c.h.b16 %v555
        %v1476 = vunpack.c.l.b16 %v556
        %v1477 = vunpack.c.h.b16 %v556
        %v1478 = vunpack.c.l.b16 %v557
        %v1479 = vunpack.c.h.b16 %v557
        %v1480 = vunpack.c.l.b16 %v558
        %v1481 = vunpack.c.h.b16 %v558
        %v1482 = vunpack.c.l.b16 %v559
        %v1483 = vunpack.c.h.b16 %v559
        %v1484 = vunpack.c.l.b16 %v560
        %v1485 = vunpack.c.h.b16 %v560
        %v1486 = vunpack.c.l.b16 %v561
        %v1487 = vunpack.c.h.b16 %v561
        %v1488 = vunpack.c.l.b16 %v562
        %v1489 = vunpack.c.h.b16 %v562
        %v1490 = vunpack.c.l.b16 %v563
        %v1491 = vunpack.c.h.b16 %v563
        %v1492 = vunpack.c.l.b16 %v564
        %v1493 = vunpack.c.h.b16 %v564
        %v1494 = vunpack.c.l.b16 %v565
        %v1495 = vunpack.c.h.b16 %v565
        %v1496 = vunpack.c.l.b16 %v566
        %v1497 = vunpack.c.h.b16 %v566
        %v1498 = vunpack.c.l.b16 %v567
        %v1499 = vunpack.c.h.b16 %v567
        %v1500 = vunpack.c.l.b16 %v568
        %v1501 = vunpack.c.h.b16 %v568
        %v1502 = vunpack.c.l.b16 %v569
        %v1503 = vunpack.c.h.b16 %v569
        %v1504 = vunpack.c.l.b16 %v570
        %v1505 = vunpack.c.h.b16 %v570
        %v1506 = vunpack.c.l.b16 %v571
        %v1507 = vunpack.c.h.b16 %v571
        %v1508 = vunpack.c.l.b16 %v572
        %v1509 = vunpack.c.h.b16 %v572
        %v1510 = vunpack.c.l.b16 %v573
        %v1511 = vunpack.c.h.b16 %v573
        %v1512 = vunpack.c.l.b16 %v574
        %v1513 = vunpack.c.h.b16 %v574
        %v1514 = vunpack.c.l.b16 %v575
        %v1515 = vunpack.c.h.b16 %v575
        %v1516 = vunpack.c.l.b16 %v576
        %v1517 = vunpack.c.h.b16 %v576
        %v1518 = vunpack.c.l.b16 %v577
        %v1519 = vunpack.c.h.b16 %v577
        %v1520 = vunpack.c.l.b16 %v578
        %v1521 = vunpack.c.h.b16 %v578
        %v1522 = vunpack.c.l.b16 %v579
        %v1523 = vunpack.c.h.b16 %v579
        %v1524 = vunpack.c.l.b16 %v580
        %v1525 = vunpack.c.h.b16 %v580
        %v1526 = vunpack.c.l.b16 %v581
        %v1527 = vunpack.c.h.b16 %v581
        %v1528 = vunpack.c.l.b16 %v582
        %v1529 = vunpack.c.h.b16 %v582
        %v1530 = vunpack.c.l.b16 %v583
        %v1531 = vunpack.c.h.b16 %v583
        %v1532 = vunpack.c.l.b16 %v584
        %v1533 = vunpack.c.h.b16 %v584
        %v1534 = vunpack.c.l.b16 %v585
        %v1535 = vunpack.c.h.b16 %v585
        %v1536 = vunpack.c.l.b16 %v586
        %v1537 = vunpack.c.h.b16 %v586
        %v1538 = vunpack.c.l.b16 %v587
        %v1539 = vunpack.c.h.b16 %v587
        %v1540 = vunpack.c.l.b16 %v588
        %v1541 = vunpack.c.h.b16 %v588
        %v1542 = vunpack.c.l.b16 %v589
        %v1543 = vunpack.c.h.b16 %v589
        %v1544 = vunpack.c.l.b16 %v590
        %v1545 = vunpack.c.h.b16 %v590
        %v1546 = vunpack.c.l.b16 %v591
        %v1547 = vunpack.c.h.b16 %v591
        %v1548 = vunpack.c.l.b16 %v592
        %v1549 = vunpack.c.h.b16 %v592
        %v1550 = vunpack.c.l.b16 %v593
        %v1551 = vunpack.c.h.b16 %v593
        %v1552 = vunpack.c.l.b16 %v594
        %v1553 = vunpack.c.h.b16 %v594
        %v1554 = vunpack.c.l.b16 %v595
        %v1555 = vunpack.c.h.b16 %v595
        %v1556 = vunpack.c.l.b16 %v596
        %v1557 = vunpack.c.h.b16 %v596
        %v1558 = vunpack.c.l.b16 %v597
        %v1559 = vunpack.c.h.b16 %v597
        %v1560 = vunpack.c.l.b16 %v598
        %v1561 = vunpack.c.h.b16 %v598
        %v1562 = vunpack.c.l.b16 %v599
        %v1563 = vunpack.c.h.b16 %v599
        %v1564 = vunpack.c.l.b16 %v600
        %v1565 = vunpack.c.h.b16 %v600
        %v1566 = vunpack.c.l.b16 %v601
        %v1567 = vunpack.c.h.b16 %v601
        %v1568 = vunpack.c.l.b16 %v602
        %v1569 = vunpack.c.h.b16 %v602
        %v1570 = vunpack.c.l.b16 %v603
        %v1571 = vunpack.c.h.b16 %v603
        %v1572 = vunpack.c.l.b16 %v604
        %v1573 = vunpack.c.h.b16 %v604
        %v1574 = vunpack.c.l.b16 %v605
        %v1575 = vunpack.c.h.b16 %v605
        %v1576 = vunpack.c.l.b16 %v606
        %v1577 = vunpack.c.h.b16 %v606
        %v1578 = vunpack.c.l.b16 %v607
        %v1579 = vunpack.c.h.b16 %v607
        %v1580 = vunpack.c.l.b16 %v608
        %v1581 = vunpack.c.h.b16 %v608
        %v1582 = vunpack.c.l.b16 %v609
        %v1583 = vunpack.c.h.b16 %v609
        %v1584 = vunpack.c.l.b16 %v610
        %v1585 = vunpack.c.h.b16 %v610
        %v1586 = vunpack.c.l.b16 %v611
        %v1587 = vunpack.c.h.b16 %v611
        %v1588 = vunpack.c.l.b16 %v612
        %v1589 = vunpack.c.h.b16 %v612
        %v1590 = vunpack.c.l.b16 %v613
        %v1591 = vunpack.c.h.b16 %v613
        %v1592 = vunpack.c.l.b16 %v614
        %v1593 = vunpack.c.h.b16 %v614
        %v1594 = vunpack.c.l.b16 %v615
        %v1595 = vunpack.c.h.b16 %v615
        %v1596 = vunpack.c.l.b16 %v616
        %v1597 = vunpack.c.h.b16 %v616
        %v1598 = vunpack.c.l.b16 %v617
        %v1599 = vunpack.c.h.b16 %v617
        %v1600 = vunpack.c.l.b16 %v618
        %v1601 = vunpack.c.h.b16 %v618
        %v1602 = vunpack.c.l.b16 %v619
        %v1603 = vunpack.c.h.b16 %v619
        %v1604 = vunpack.c.l.b16 %v620
        %v1605 = vunpack.c.h.b16 %v620
        %v1606 = vunpack.c.l.b16 %v621
        %v1607 = vunpack.c.h.b16 %v621
        %v1608 = vunpack.c.l.b16 %v622
        %v1609 = vunpack.c.h.b16 %v622
        %v1610 = vunpack.c.l.b16 %v623
        %v1611 = vunpack.c.h.b16 %v623
        %v1612 = vunpack.c.l.b16 %v624
        %v1613 = vunpack.c.h.b16 %v624
        %v1614 = vunpack.c.l.b16 %v625
        %v1615 = vunpack.c.h.b16 %v625
        %v1616 = vunpack.c.l.b16 %v626
        %v1617 = vunpack.c.h.b16 %v626
        %v1618 = vunpack.c.l.b16 %v627
        %v1619 = vunpack.c.h.b16 %v627
        %v1620 = vunpack.c.l.b16 %v628
        %v1621 = vunpack.c.h.b16 %v628
        %v1622 = vunpack.c.l.b16 %v629
        %v1623 = vunpack.c.h.b16 %v629
        %v1624 = vunpack.c.l.b16 %v630
        %v1625 = vunpack.c.h.b16 %v630
        %v1626 = vunpack.c.l.b16 %v631
        %v1627 = vunpack.c.h.b16 %v631
        %v1628 = vunpack.c.l.b16 %v632
        %v1629 = vunpack.c.h.b16 %v632
        %v1630 = vunpack.c.l.b16 %v633
        %v1631 = vunpack.c.h.b16 %v633
        %v1632 = vunpack.c.l.b16 %v634
        %v1633 = vunpack.c.h.b16 %v634
        %v1634 = vunpack.c.l.b16 %v635
        %v1635 = vunpack.c.h.b16 %v635
        %v1636 = vunpack.c.l.b16 %v636
        %v1637 = vunpack.c.h.b16 %v636
        %v1638 = vunpack.c.l.b16 %v637
        %v1639 = vunpack.c.h.b16 %v637
        %v1640 = vunpack.c.l.b16 %v638
        %v1641 = vunpack.c.h.b16 %v638
        %v1642 = vunpack.c.l.b16 %v639
        %v1643 = vunpack.c.h.b16 %v639
        %v1644 = vunpack.c.l.b16 %v640
        %v1645 = vunpack.c.h.b16 %v640
        %v1646 = vunpack.c.l.b16 %v641
        %v1647 = vunpack.c.h.b16 %v641
        %v1648 = vunpack.c.l.b16 %v642
        %v1649 = vunpack.c.h.b16 %v642
        %v1650 = vunpack.c.l.b16 %v643
        %v1651 = vunpack.c.h.b16 %v643
        %v1652 = vunpack.c.l.b16 %v644
        %v1653 = vunpack.c.h.b16 %v644
        %v1654 = vunpack.c.l.b16 %v645
        %v1655 = vunpack.c.h.b16 %v645
        %v1656 = vunpack.c.l.b16 %v646
        %v1657 = vunpack.c.h.b16 %v646
        %v1658 = vunpack.c.l.b16 %v647
        %v1659 = vunpack.c.h.b16 %v647
        %v1660 = vunpack.c.l.b16 %v648
        %v1661 = vunpack.c.h.b16 %v648
        %v1662 = vunpack.c.l.b16 %v649
        %v1663 = vunpack.c.h.b16 %v649
        %v1664 = vunpack.c.l.b16 %v650
        %v1665 = vunpack.c.h.b16 %v650
        %v1666 = vunpack.c.l.b16 %v651
        %v1667 = vunpack.c.h.b16 %v651
        %v1668 = vunpack.c.l.b16 %v652
        %v1669 = vunpack.c.h.b16 %v652
        %v1670 = vunpack.c.l.b16 %v653
        %v1671 = vunpack.c.h.b16 %v653
        %v1672 = vunpack.c.l.b16 %v654
        %v1673 = vunpack.c.h.b16 %v654
        %v1674 = vunpack.c.l.b16 %v655
        %v1675 = vunpack.c.h.b16 %v655
        %v1676 = vunpack.c.l.b16 %v656
        %v1677 = vunpack.c.h.b16 %v656
        %v1678 = vunpack.c.l.b16 %v657
        %v1679 = vunpack.c.h.b16 %v657
        %v1680 = vunpack.c.l.b16 %v658
        %v1681 = vunpack.c.h.b16 %v658
        %v1682 = vunpack.c.l.b16 %v659
        %v1683 = vunpack.c.h.b16 %v659
        %v1684 = vunpack.c.l.b16 %v660
        %v1685 = vunpack.c.h.b16 %v660
        %v1686 = vunpack.c.l.b16 %v661
        %v1687 = vunpack.c.h.b16 %v661
        %v1688 = vunpack.c.l.b16 %v662
        %v1689 = vunpack.c.h.b16 %v662
        %v1690 = vunpack.c.l.b16 %v663
        %v1691 = vunpack.c.h.b16 %v663
        %v1692 = vunpack.c.l.b16 %v664
        %v1693 = vunpack.c.h.b16 %v664
        %v1694 = vunpack.c.l.b16 %v665
        %v1695 = vunpack.c.h.b16 %v665
        %v1696 = vunpack.c.l.b16 %v666
        %v1697 = vunpack.c.h.b16 %v666
        %v1698 = vunpack.c.l.b16 %v667
        %v1699 = vunpack.c.h.b16 %v667
        %v1700 = vunpack.c.l.b16 %v668
        %v1701 = vunpack.c.h.b16 %v668
        %v1702 = vunpack.c.l.b16 %v669
        %v1703 = vunpack.c.h.b16 %v669
        %v1704 = vunpack.c.l.b16 %v670
        %v1705 = vunpack.c.h.b16 %v670
        %v1706 = vunpack.c.l.b16 %v671
        %v1707 = vunpack.c.h.b16 %v671
        %v1708 = vunpack.c.l.b16 %v672
        %v1709 = vunpack.c.h.b16 %v672
        %v1710 = vunpack.c.l.b16 %v673
        %v1711 = vunpack.c.h.b16 %v673
        %v1712 = vunpack.c.l.b16 %v674
        %v1713 = vunpack.c.h.b16 %v674
        %v1714 = vunpack.c.l.b16 %v675
        %v1715 = vunpack.c.h.b16 %v675
        %v1716 = vunpack.c.l.b16 %v676
        %v1717 = vunpack.c.h.b16 %v676
        %v1718 = vunpack.c.l.b16 %v677
        %v1719 = vunpack.c.h.b16 %v677
        %v1720 = vunpack.c.l.b16 %v678
        %v1721 = vunpack.c.h.b16 %v678
        %v1722 = vunpack.c.l.b16 %v679
        %v1723 = vunpack.c.h.b16 %v679
        %v1724 = vunpack.c.l.b16 %v680
        %v1725 = vunpack.c.h.b16 %v680
        %v1726 = vunpack.c.l.b16 %v681
        %v1727 = vunpack.c.h.b16 %v681
        %v1728 = vunpack.c.l.b16 %v682
        %v1729 = vunpack.c.h.b16 %v682
        %v1730 = vunpack.c.l.b16 %v683
        %v1731 = vunpack.c.h.b16 %v683
        %v1732 = vunpack.c.l.b16 %v684
        %v1733 = vunpack.c.h.b16 %v684
        %v1734 = vunpack.c.l.b16 %v685
        %v1735 = vunpack.c.h.b16 %v685
        %v1736 = vunpack.c.l.b16 %v686
        %v1737 = vunpack.c.h.b16 %v686
        %v1738 = vunpack.c.l.b16 %v687
        %v1739 = vunpack.c.h.b16 %v687
        %v1740 = vunpack.c.l.b16 %v688
        %v1741 = vunpack.c.h.b16 %v688
        %v1742 = vunpack.c.l.b16 %v689
        %v1743 = vunpack.c.h.b16 %v689
        %v1744 = vunpack.c.l.b16 %v690
        %v1745 = vunpack.c.h.b16 %v690
        %v1746 = vunpack.c.l.b16 %v691
        %v1747 = vunpack.c.h.b16 %v691
        %v1748 = vunpack.c.l.b16 %v692
        %v1749 = vunpack.c.h.b16 %v692
        %v1750 = vunpack.c.l.b16 %v693
        %v1751 = vunpack.c.h.b16 %v693
        %v1752 = vunpack.c.l.b16 %v694
        %v1753 = vunpack.c.h.b16 %v694
        %v1754 = vunpack.c.l.b16 %v695
        %v1755 = vunpack.c.h.b16 %v695
        %v1756 = vunpack.c.l.b16 %v696
        %v1757 = vunpack.c.h.b16 %v696
        %v1758 = vunpack.c.l.b16 %v697
        %v1759 = vunpack.c.h.b16 %v697
        %v1760 = vunpack.c.l.b16 %v698
        %v1761 = vunpack.c.h.b16 %v698
        %v1762 = vunpack.c.l.b16 %v699
        %v1763 = vunpack.c.h.b16 %v699
        %v1764 = vunpack.c.l.b16 %v700
        %v1765 = vunpack.c.h.b16 %v700
        %v1766 = vunpack.c.l.b16 %v701
        %v1767 = vunpack.c.h.b16 %v701
        %v1768 = vunpack.c.l.b16 %v702
        %v1769 = vunpack.c.h.b16 %v702
        %v1770 = vunpack.c.l.b16 %v703
        %v1771 = vunpack.c.h.b16 %v703
        %v1772 = vunpack.c.l.b16 %v704
        %v1773 = vunpack.c.h.b16 %v704
        %v1774 = vunpack.c.l.b16 %v705
        %v1775 = vunpack.c.h.b16 %v705
        %v1776 = vunpack.c.l.b16 %v706
        %v1777 = vunpack.c.h.b16 %v706
        %v1778 = vunpack.c.l.b16 %v707
        %v1779 = vunpack.c.h.b16 %v707
        %v1780 = vunpack.c.l.b16 %v708
        %v1781 = vunpack.c.h.b16 %v708
        %v1782 = vunpack.c.l.b16 %v709
        %v1783 = vunpack.c.h.b16 %v709
        %v1784 = vunpack.c.l.b16 %v710
        %v1785 = vunpack.c.h.b16 %v710
        %v1786 = vunpack.c.l.b16 %v711
        %v1787 = vunpack.c.h.b16 %v711
        %v1788 = vunpack.c.l.b16 %v712
        %v1789 = vunpack.c.h.b16 %v712
        %v1790 = vunpack.c.l.b16 %v713
        %v1791 = vunpack.c.h.b16 %v713
        %v1792 = vunpack.c.l.b16 %v714
        %v1793 = vunpack.c.h.b16 %v714
        %v1794 = vunpack.c.l.b16 %v715
        %v1795 = vunpack.c.h.b16 %v715
        %v1796 = vunpack.c.l.b16 %v716
        %v1797 = vunpack.c.h.b16 %v716
        %v1798 = vunpack.c.l.b16 %v717
        %v1799 = vunpack.c.h.b16 %v717
        %v1800 = vunpack.c.l.b16 %v718
        %v1801 = vunpack.c.h.b16 %v718
        %v1802 = vunpack.c.l.b16 %v719
        %v1803 = vunpack.c.h.b16 %v719
        %v1804 = vunpack.c.l.b16 %v720
        %v1805 = vunpack.c.h.b16 %v720
        %v1806 = vunpack.c.l.b16 %v721
        %v1807 = vunpack.c.h.b16 %v721
        %v1808 = vunpack.c.l.b16 %v722
        %v1809 = vunpack.c.h.b16 %v722
        %v1810 = vunpack.c.l.b16 %v723
        %v1811 = vunpack.c.h.b16 %v723
        %v1812 = vpack.c.b16 %v1302, %v1300
        %v1813 = vpack.c.b16 %v1303, %v1301
        %v1814 = vpack.c.b16 %v1306, %v1304
        %v1815 = vpack.c.b16 %v1307, %v1305
        %v1816 = vpack.c.b16 %v1310, %v1308
        %v1817 = vpack.c.b16 %v1311, %v1309
        %v1818 = vpack.c.b16 %v1314, %v1312
        %v1819 = vpack.c.b16 %v1315, %v1313
        %v1820 = vpack.c.b16 %v1318, %v1316
        %v1821 = vpack.c.b16 %v1319, %v1317
        %v1822 = vpack.c.b16 %v1322, %v1320
        %v1823 = vpack.c.b16 %v1323, %v1321
        %v1824 = vpack.c.b16 %v1326, %v1324
        %v1825 = vpack.c.b16 %v1327, %v1325
        %v1826 = vpack.c.b16 %v1330, %v1328
        %v1827 = vpack.c.b16 %v1331, %v1329
        %v1828 = vpack.c.b16 %v1334, %v1332
        %v1829 = vpack.c.b16 %v1335, %v1333
        %v1830 = vpack.c.b16 %v1338, %v1336
        %v1831 = vpack.c.b16 %v1339, %v1337
        %v1832 = vpack.c.b16 %v1342, %v1340
        %v1833 = vpack.c.b16 %v1343, %v1341
        %v1834 = vpack.c.b16 %v1346, %v1344
        %v1835 = vpack.c.b16 %v1347, %v1345
        %v1836 = vpack.c.b16 %v1350, %v1348
        %v1837 = vpack.c.b16 %v1351, %v1349
        %v1838 = vpack.c.b16 %v1354, %v1352
        %v1839 = vpack.c.b16 %v1355, %v1353
        %v1840 = vpack.c.b16 %v1358, %v1356
        %v1841 = vpack.c.b16 %v1359, %v1357
        %v1842 = vpack.c.b16 %v1362, %v1360
        %v1843 = vpack.c.b16 %v1363, %v1361
        %v1844 = vpack.c.b16 %v1366, %v1364
        %v1845 = vpack.c.b16 %v1367, %v1365
        %v1846 = vpack.c.b16 %v1370, %v1368
        %v1847 = vpack.c.b16 %v1371, %v1369
        %v1848 = vpack.c.b16 %v1374, %v1372
        %v1849 = vpack.c.b16 %v1375, %v1373
        %v1850 = vpack.c.b16 %v1378, %v1376
        %v1851 = vpack.c.b16 %v1379, %v1377
        %v1852 = vpack.c.b16 %v1382, %v1380
        %v1853 = vpack.c.b16 %v1383, %v1381
        %v1854 = vpack.c.b16 %v1386, %v1384
        %v1855 = vpack.c.b16 %v1387, %v1385
        %v1856 = vpack.c.b16 %v1390, %v1388
        %v1857 = vpack.c.b16 %v1391, %v1389
        %v1858 = vpack.c.b16 %v1394, %v1392
        %v1859 = vpack.c.b16 %v1395, %v1393
        %v1860 = vpack.c.b16 %v1398, %v1396
        %v1861 = vpack.c.b16 %v1399, %v1397
        %v1862 = vpack.c.b16 %v1402, %v1400
        %v1863 = vpack.c.b16 %v1403, %v1401
        %v1864 = vpack.c.b16 %v1406, %v1404
        %v1865 = vpack.c.b16 %v1407, %v1405
        %v1866 = vpack.c.b16 %v1410, %v1408
        %v1867 = vpack.c.b16 %v1411, %v1409
        %v1868 = vpack.c.b16 %v1414, %v1412
        %v1869 = vpack.c.b16 %v1415, %v1413
        %v1870 = vpack.c.b16 %v1418, %v1416
        %v1871 = vpack.c.b16 %v1419, %v1417
        %v1872 = vpack.c.b16 %v1422, %v1420
        %v1873 = vpack.c.b16 %v1423, %v1421
        %v1874 = vpack.c.b16 %v1426, %v1424
        %v1875 = vpack.c.b16 %v1427, %v1425
        %v1876 = vpack.c.b16 %v1430, %v1428
        %v1877 = vpack.c.b16 %v1431, %v1429
        %v1878 = vpack.c.b16 %v1434, %v1432
        %v1879 = vpack.c.b16 %v1435, %v1433
        %v1880 = vpack.c.b16 %v1438, %v1436
        %v1881 = vpack.c.b16 %v1439, %v1437
        %v1882 = vpack.c.b16 %v1442, %v1440
        %v1883 = vpack.c.b16 %v1443, %v1441
        %v1884 = vpack.c.b16 %v1446, %v1444
        %v1885 = vpack.c.b16 %v1447, %v1445
        %v1886 = vpack.c.b16 %v1450, %v1448
        %v1887 = vpack.c.b16 %v1451, %v1449
        %v1888 = vpack.c.b16 %v1454, %v1452
        %v1889 = vpack.c.b16 %v1455, %v1453
        %v1890 = vpack.c.b16 %v1458, %v1456
        %v1891 = vpack.c.b16 %v1459, %v1457
        %v1892 = vpack.c.b16 %v1462, %v1460
        %v1893 = vpack.c.b16 %v1463, %v1461
        %v1894 = vpack.c.b16 %v1466, %v1464
        %v1895 = vpack.c.b16 %v1467, %v1465
        %v1896 = vpack.c.b16 %v1470, %v1468
        %v1897 = vpack.c.b16 %v1471, %v1469
        %v1898 = vpack.c.b16 %v1474, %v1472
        %v1899 = vpack.c.b16 %v1475, %v1473
        %v1900 = vpack.c.b16 %v1478, %v1476
        %v1901 = vpack.c.b16 %v1479, %v1477
        %v1902 = vpack.c.b16 %v1482, %v1480
        %v1903 = vpack.c.b16 %v1483, %v1481
        %v1904 = vpack.c.b16 %v1486, %v1484
        %v1905 = vpack.c.b16 %v1487, %v1485
        %v1906 = vpack.c.b16 %v1490, %v1488
        %v1907 = vpack.c.b16 %v1491, %v1489
        %v1908 = vpack.c.b16 %v1494, %v1492
        %v1909 = vpack.c.b16 %v1495, %v1493
        %v1910 = vpack.c.b16 %v1498, %v1496
        %v1911 = vpack.c.b16 %v1499, %v1497
        %v1912 = vpack.c.b16 %v1502, %v1500
        %v1913 = vpack.c.b16 %v1503, %v1501
        %v1914 = vpack.c.b16 %v1506, %v1504
        %v1915 = vpack.c.b16 %v1507, %v1505
        %v1916 = vpack.c.b16 %v1510, %v1508
        %v1917 = vpack.c.b16 %v1511, %v1509
        %v1918 = vpack.c.b16 %v1514, %v1512
        %v1919 = vpack.c.b16 %v1515, %v1513
        %v1920 = vpack.c.b16 %v1518, %v1516
        %v1921 = vpack.c.b16 %v1519, %v1517
        %v1922 = vpack.c.b16 %v1522, %v1520
        %v1923 = vpack.c.b16 %v1523, %v1521
        %v1924 = vpack.c.b16 %v1526, %v1524
        %v1925 = vpack.c.b16 %v1527, %v1525
        %v1926 = vpack.c.b16 %v1530, %v1528
        %v1927 = vpack.c.b16 %v1531, %v1529
        %v1928 = vpack.c.b16 %v1534, %v1532
        %v1929 = vpack.c.b16 %v1535, %v1533
        %v1930 = vpack.c.b16 %v1538, %v1536
        %v1931 = vpack.c.b16 %v1539, %v1537
        %v1932 = vpack.c.b16 %v1542, %v1540
        %v1933 = vpack.c.b16 %v1543, %v1541
        %v1934 = vpack.c.b16 %v1546, %v1544
        %v1935 = vpack.c.b16 %v1547, %v1545
        %v1936 = vpack.c.b16 %v1550, %v1548
        %v1937 = vpack.c.b16 %v1551, %v1549
        %v1938 = vpack.c.b16 %v1554, %v1552
        %v1939 = vpack.c.b16 %v1555, %v1553
        %v1940 = vpack.c.b16 %v1558, %v1556
        %v1941 = vpack.c.b16 %v1559, %v1557
        %v1942 = vpack.c.b16 %v1562, %v1560
        %v1943 = vpack.c.b16 %v1563, %v1561
        %v1944 = vpack.c.b16 %v1566, %v1564
        %v1945 = vpack.c.b16 %v1567, %v1565
        %v1946 = vpack.c.b16 %v1570, %v1568
        %v1947 = vpack.c.b16 %v1571, %v1569
        %v1948 = vpack.c.b16 %v1574, %v1572
        %v1949 = vpack.c.b16 %v1575, %v1573
        %v1950 = vpack.c.b16 %v1578, %v1576
        %v1951 = vpack.c.b16 %v1579, %v1577
        %v1952 = vpack.c.b16 %v1582, %v1580
        %v1953 = vpack.c.b16 %v1583, %v1581
        %v1954 = vpack.c.b16 %v1586, %v1584
        %v1955 = vpack.c.b16 %v1587, %v1585
        %v1956 = vpack.c.b16 %v1590, %v1588
        %v1957 = vpack.c.b16 %v1591, %v1589
        %v1958 = vpack.c.b16 %v1594, %v1592
        %v1959 = vpack.c.b16 %v1595, %v1593
        %v1960 = vpack.c.b16 %v1598, %v1596
        %v1961 = vpack.c.b16 %v1599, %v1597
        %v1962 = vpack.c.b16 %v1602, %v1600
        %v1963 = vpack.c.b16 %v1603, %v1601
        %v1964 = vpack.c.b16 %v1606, %v1604
        %v1965 = vpack.c.b16 %v1607, %v1605
        %v1966 = vpack.c.b16 %v1610, %v1608
        %v1967 = vpack.c.b16 %v1611, %v1609
        %v1968 = vpack.c.b16 %v1614, %v1612
        %v1969 = vpack.c.b16 %v1615, %v1613
        %v1970 = vpack.c.b16 %v1618, %v1616
        %v1971 = vpack.c.b16 %v1619, %v1617
        %v1972 = vpack.c.b16 %v1622, %v1620
        %v1973 = vpack.c.b16 %v1623, %v1621
        %v1974 = vpack.c.b16 %v1626, %v1624
        %v1975 = vpack.c.b16 %v1627, %v1625
        %v1976 = vpack.c.b16 %v1630, %v1628
        %v1977 = vpack.c.b16 %v1631, %v1629
        %v1978 = vpack.c.b16 %v1634, %v1632
        %v1979 = vpack.c.b16 %v1635, %v1633
        %v1980 = vpack.c.b16 %v1638, %v1636
        %v1981 = vpack.c.b16 %v1639, %v1637
        %v1982 = vpack.c.b16 %v1642, %v1640
        %v1983 = vpack.c.b16 %v1643, %v1641
        %v1984 = vpack.c.b16 %v1646, %v1644
        %v1985 = vpack.c.b16 %v1647, %v1645
        %v1986 = vpack.c.b16 %v1650, %v1648
        %v1987 = vpack.c.b16 %v1651, %v1649
        %v1988 = vpack.c.b16 %v1654, %v1652
        %v1989 = vpack.c.b16 %v1655, %v1653
        %v1990 = vpack.c.b16 %v1658, %v1656
        %v1991 = vpack.c.b16 %v1659, %v1657
        %v1992 = vpack.c.b16 %v1662, %v1660
        %v1993 = vpack.c.b16 %v1663, %v1661
        %v1994 = vpack.c.b16 %v1666, %v1664
        %v1995 = vpack.c.b16 %v1667, %v1665
        %v1996 = vpack.c.b16 %v1670, %v1668
        %v1997 = vpack.c.b16 %v1671, %v1669
        %v1998 = vpack.c.b16 %v1674, %v1672
        %v1999 = vpack.c.b16 %v1675, %v1673
        %v2000 = vpack.c.b16 %v1678, %v1676
        %v2001 = vpack.c.b16 %v1679, %v1677
        %v2002 = vpack.c.b16 %v1682, %v1680
        %v2003 = vpack.c.b16 %v1683, %v1681
        %v2004 = vpack.c.b16 %v1686, %v1684
        %v2005 = vpack.c.b16 %v1687, %v1685
        %v2006 = vpack.c.b16 %v1690, %v1688
        %v2007 = vpack.c.b16 %v1691, %v1689
        %v2008 = vpack.c.b16 %v1694, %v1692
        %v2009 = vpack.c.b16 %v1695, %v1693
        %v2010 = vpack.c.b16 %v1698, %v1696
        %v2011 = vpack.c.b16 %v1699, %v1697
        %v2012 = vpack.c.b16 %v1702, %v1700
        %v2013 = vpack.c.b16 %v1703, %v1701
        %v2014 = vpack.c.b16 %v1706, %v1704
        %v2015 = vpack.c.b16 %v1707, %v1705
        %v2016 = vpack.c.b16 %v1710, %v1708
        %v2017 = vpack.c.b16 %v1711, %v1709
        %v2018 = vpack.c.b16 %v1714, %v1712
        %v2019 = vpack.c.b16 %v1715, %v1713
        %v2020 = vpack.c.b16 %v1718, %v1716
        %v2021 = vpack.c.b16 %v1719, %v1717
        %v2022 = vpack.c.b16 %v1722, %v1720
        %v2023 = vpack.c.b16 %v1723, %v1721
        %v2024 = vpack.c.b16 %v1726, %v1724
        %v2025 = vpack.c.b16 %v1727, %v1725
        %v2026 = vpack.c.b16 %v1730, %v1728
        %v2027 = vpack.c.b16 %v1731, %v1729
        %v2028 = vpack.c.b16 %v1734, %v1732
        %v2029 = vpack.c.b16 %v1735, %v1733
        %v2030 = vpack.c.b16 %v1738, %v1736
        %v2031 = vpack.c.b16 %v1739, %v1737
        %v2032 = vpack.c.b16 %v1742, %v1740
        %v2033 = vpack.c.b16 %v1743, %v1741
        %v2034 = vpack.c.b16 %v1746, %v1744
        %v2035 = vpack.c.b16 %v1747, %v1745
        %v2036 = vpack.c.b16 %v1750, %v1748
        %v2037 = vpack.c.b16 %v1751, %v1749
        %v2038 = vpack.c.b16 %v1754, %v1752
        %v2039 = vpack.c.b16 %v1755, %v1753
        %v2040 = vpack.c.b16 %v1758, %v1756
        %v2041 = vpack.c.b16 %v1759, %v1757
        %v2042 = vpack.c.b16 %v1762, %v1760
        %v2043 = vpack.c.b16 %v1763, %v1761
        %v2044 = vpack.c.b16 %v1766, %v1764
        %v2045 = vpack.c.b16 %v1767, %v1765
        %v2046 = vpack.c.b16 %v1770, %v1768
        %v2047 = vpack.c.b16 %v1771, %v1769
        %v2048 = vpack.c.b16 %v1774, %v1772
        %v2049 = vpack.c.b16 %v1775, %v1773
        %v2050 = vpack.c.b16 %v1778, %v1776
        %v2051 = vpack.c.b16 %v1779, %v1777
        %v2052 = vpack.c.b16 %v1782, %v1780
        %v2053 = vpack.c.b16 %v1783, %v1781
        %v2054 = vpack.c.b16 %v1786, %v1784
        %v2055 = vpack.c.b16 %v1787, %v1785
        %v2056 = vpack.c.b16 %v1790, %v1788
        %v2057 = vpack.c.b16 %v1791, %v1789
        %v2058 = vpack.c.b16 %v1794, %v1792
        %v2059 = vpack.c.b16 %v1795, %v1793
        %v2060 = vpack.c.b16 %v1798, %v1796
        %v2061 = vpack.c.b16 %v1799, %v1797
        %v2062 = vpack.c.b16 %v1802, %v1800
        %v2063 = vpack.c.b16 %v1803, %v1801
        %v2064 = vpack.c.b16 %v1806, %v1804
        %v2065 = vpack.c.b16 %v1807, %v1805
        %v2066 = vpack.c.b16 %v1810, %v1808
        %v2067 = vpack.c.b16 %v1811, %v1809
        %2324 = vmatprep.subr.bf16.mxu0 %v1813
        %2325 = vmatpush1.bf16.msra.mxu0 %v1812
        %2326 = vmatprep.subr.bf16.mxu0 %v1815
        %2327 = vmatpush1.bf16.msra.mxu0 %v1814
        %2328 = vmatprep.subr.bf16.mxu0 %v1817
        %2329 = vmatpush1.bf16.msra.mxu0 %v1816
        %2330 = vmatprep.subr.bf16.mxu0 %v1819
        %2331 = vmatpush1.bf16.msra.mxu0 %v1818
        %2332 = vmatprep.subr.bf16.mxu0 %v1821
        %2333 = vmatpush1.bf16.msra.mxu0 %v1820
        %2334 = vmatprep.subr.bf16.mxu0 %v1823
        %2335 = vmatpush1.bf16.msra.mxu0 %v1822
        %2336 = vmatprep.subr.bf16.mxu0 %v1825
        %2337 = vmatpush1.bf16.msra.mxu0 %v1824
        %2338 = vmatprep.subr.bf16.mxu0 %v1827
        %2339 = vmatpush1.bf16.msra.mxu0 %v1826
        %2340 = vmatprep.subr.bf16.mxu0 %v1829
        %2341 = vmatpush1.bf16.msra.mxu0 %v1828
        %2342 = vmatprep.subr.bf16.mxu0 %v1831
        %2343 = vmatpush1.bf16.msra.mxu0 %v1830
        %2344 = vmatprep.subr.bf16.mxu0 %v1833
        %2345 = vmatpush1.bf16.msra.mxu0 %v1832
        %2346 = vmatprep.subr.bf16.mxu0 %v1835
        %2347 = vmatpush1.bf16.msra.mxu0 %v1834
        %2348 = vmatprep.subr.bf16.mxu0 %v1837
        %2349 = vmatpush1.bf16.msra.mxu0 %v1836
        %2350 = vmatprep.subr.bf16.mxu0 %v1839
        %2351 = vmatpush1.bf16.msra.mxu0 %v1838
        %2352 = vmatprep.subr.bf16.mxu0 %v1841
        %2353 = vmatpush1.bf16.msra.mxu0 %v1840
        %2354 = vmatprep.subr.bf16.mxu0 %v1843
        %2355 = vmatpush1.bf16.msra.mxu0 %v1842
        %2356 = vmatprep.mubr.bf16.mxu0 %v917
        %2357 = vmatmul.mubr.bf16.gmra.mrb[0].mxu0 %v916
        %v2358 = vpop.f32.mrb[0].mxu0
        %v2359 = vadd.f32 0.0, %v2358
        %v2360 = vpop.f32.mrb[0].mxu0
        %v2361 = vadd.f32 0.0, %v2360
        %v2362 = vpop.f32.mrb[0].mxu0
        %v2363 = vadd.f32 0.0, %v2362
        %v2364 = vpop.f32.mrb[0].mxu0
        %v2365 = vadd.f32 0.0, %v2364
        %2366 = vmatprep.mubr.bf16.mxu0 %v933
        %2367 = vmatmul.mubr.bf16.gmra.mrb[0].mxu0 %v932
        %v2368 = vpop.f32.mrb[0].mxu0
        %v2369 = vadd.f32 0.0, %v2368
        %v2370 = vpop.f32.mrb[0].mxu0
        %v2371 = vadd.f32 0.0, %v2370
        %v2372 = vpop.f32.mrb[0].mxu0
        %v2373 = vadd.f32 0.0, %v2372
        %v2374 = vpop.f32.mrb[0].mxu0
        %v2375 = vadd.f32 0.0, %v2374
        %2376 = vmatprep.mubr.bf16.mxu0 %v949
        %2377 = vmatmul.mubr.bf16.gmra.mrb[0].mxu0 %v948
        %v2378 = vpop.f32.mrb[0].mxu0
        %v2379 = vadd.f32 0.0, %v2378
        %v2380 = vpop.f32.mrb[0].mxu0
        %v2381 = vadd.f32 0.0, %v2380
        %v2382 = vpop.f32.mrb[0].mxu0
        %v2383 = vadd.f32 0.0, %v2382
        %v2384 = vpop.f32.mrb[0].mxu0
        %v2385 = vadd.f32 0.0, %v2384
        %2386 = vmatprep.mubr.bf16.mxu0 %v965
        %2387 = vmatmul.mubr.bf16.gmra.mrb[0].mxu0 %v964
        %v2388 = vpop.f32.mrb[0].mxu0
        %v2389 = vadd.f32 0.0, %v2388
        %v2390 = vpop.f32.mrb[0].mxu0
        %v2391 = vadd.f32 0.0, %v2390
        %v2392 = vpop.f32.mrb[0].mxu0
        %v2393 = vadd.f32 0.0, %v2392
        %v2394 = vpop.f32.mrb[0].mxu0
        %v2395 = vadd.f32 0.0, %v2394
        %2396 = vdwg.mxu0
        %2397 = vmatprep.subr.bf16.mxu0 %v1845
        %2398 = vmatpush1.bf16.msra.mxu0 %v1844
        %2399 = vmatprep.subr.bf16.mxu0 %v1847
        %2400 = vmatpush1.bf16.msra.mxu0 %v1846
        %2401 = vmatprep.subr.bf16.mxu0 %v1849
        %2402 = vmatpush1.bf16.msra.mxu0 %v1848
        %2403 = vmatprep.subr.bf16.mxu0 %v1851
        %2404 = vmatpush1.bf16.msra.mxu0 %v1850
        %2405 = vmatprep.subr.bf16.mxu0 %v1853
        %2406 = vmatpush1.bf16.msra.mxu0 %v1852
        %2407 = vmatprep.subr.bf16.mxu0 %v1855
        %2408 = vmatpush1.bf16.msra.mxu0 %v1854
        %2409 = vmatprep.subr.bf16.mxu0 %v1857
        %2410 = vmatpush1.bf16.msra.mxu0 %v1856
        %2411 = vmatprep.subr.bf16.mxu0 %v1859
        %2412 = vmatpush1.bf16.msra.mxu0 %v1858
        %2413 = vmatprep.subr.bf16.mxu0 %v1861
        %2414 = vmatpush1.bf16.msra.mxu0 %v1860
        %2415 = vmatprep.subr.bf16.mxu0 %v1863
        %2416 = vmatpush1.bf16.msra.mxu0 %v1862
        %2417 = vmatprep.subr.bf16.mxu0 %v1865
        %2418 = vmatpush1.bf16.msra.mxu0 %v1864
        %2419 = vmatprep.subr.bf16.mxu0 %v1867
        %2420 = vmatpush1.bf16.msra.mxu0 %v1866
        %2421 = vmatprep.subr.bf16.mxu0 %v1869
        %2422 = vmatpush1.bf16.msra.mxu0 %v1868
        %2423 = vmatprep.subr.bf16.mxu0 %v1871
        %2424 = vmatpush1.bf16.msra.mxu0 %v1870
        %2425 = vmatprep.subr.bf16.mxu0 %v1873
        %2426 = vmatpush1.bf16.msra.mxu0 %v1872
        %2427 = vmatprep.subr.bf16.mxu0 %v1875
        %2428 = vmatpush1.bf16.msra.mxu0 %v1874
        %2429 = vmatprep.mubr.bf16.mxu0 %v919
        %2430 = vmatmul.mubr.bf16.gmra.mrb[0].mxu0 %v918
        %v2431 = vpop.f32.mrb[0].mxu0
        %v2432 = vadd.f32 %v2359, %v2431
        %v2433 = vpop.f32.mrb[0].mxu0
        %v2434 = vadd.f32 %v2361, %v2433
        %v2435 = vpop.f32.mrb[0].mxu0
        %v2436 = vadd.f32 %v2363, %v2435
        %v2437 = vpop.f32.mrb[0].mxu0
        %v2438 = vadd.f32 %v2365, %v2437
        %2439 = vmatprep.mubr.bf16.mxu0 %v935
        %2440 = vmatmul.mubr.bf16.gmra.mrb[0].mxu0 %v934
        %v2441 = vpop.f32.mrb[0].mxu0
        %v2442 = vadd.f32 %v2369, %v2441
        %v2443 = vpop.f32.mrb[0].mxu0
        %v2444 = vadd.f32 %v2371, %v2443
        %v2445 = vpop.f32.mrb[0].mxu0
        %v2446 = vadd.f32 %v2373, %v2445
        %v2447 = vpop.f32.mrb[0].mxu0
        %v2448 = vadd.f32 %v2375, %v2447
        %2449 = vmatprep.mubr.bf16.mxu0 %v951
        %2450 = vmatmul.mubr.bf16.gmra.mrb[0].mxu0 %v950
        %v2451 = vpop.f32.mrb[0].mxu0
        %v2452 = vadd.f32 %v2379, %v2451
        %v2453 = vpop.f32.mrb[0].mxu0
        %v2454 = vadd.f32 %v2381, %v2453
        %v2455 = vpop.f32.mrb[0].mxu0
        %v2456 = vadd.f32 %v2383, %v2455
        %v2457 = vpop.f32.mrb[0].mxu0
        %v2458 = vadd.f32 %v2385, %v2457
        %2459 = vmatprep.mubr.bf16.mxu0 %v967
        %2460 = vmatmul.mubr.bf16.gmra.mrb[0].mxu0 %v966
        %v2461 = vpop.f32.mrb[0].mxu0
        %v2462 = vadd.f32 %v2389, %v2461
        %v2463 = vpop.f32.mrb[0].mxu0
        %v2464 = vadd.f32 %v2391, %v2463
        %v2465 = vpop.f32.mrb[0].mxu0
        %v2466 = vadd.f32 %v2393, %v2465
        %v2467 = vpop.f32.mrb[0].mxu0
        %v2468 = vadd.f32 %v2395, %v2467
        %2469 = vdwg.mxu0
        %2470 = vmatprep.subr.bf16.mxu0 %v1877
        %2471 = vmatpush1.bf16.msra.mxu0 %v1876
        %2472 = vmatprep.subr.bf16.mxu0 %v1879
        %2473 = vmatpush1.bf16.msra.mxu0 %v1878
        %2474 = vmatprep.subr.bf16.mxu0 %v1881
        %2475 = vmatpush1.bf16.msra.mxu0 %v1880
        %2476 = vmatprep.subr.bf16.mxu0 %v1883
        %2477 = vmatpush1.bf16.msra.mxu0 %v1882
        %2478 = vmatprep.subr.bf16.mxu0 %v1885
        %2479 = vmatpush1.bf16.msra.mxu0 %v1884
        %2480 = vmatprep.subr.bf16.mxu0 %v1887
        %2481 = vmatpush1.bf16.msra.mxu0 %v1886
        %2482 = vmatprep.subr.bf16.mxu0 %v1889
        %2483 = vmatpush1.bf16.msra.mxu0 %v1888
        %2484 = vmatprep.subr.bf16.mxu0 %v1891
        %2485 = vmatpush1.bf16.msra.mxu0 %v1890
        %2486 = vmatprep.subr.bf16.mxu0 %v1893
        %2487 = vmatpush1.bf16.msra.mxu0 %v1892
        %2488 = vmatprep.subr.bf16.mxu0 %v1895
        %2489 = vmatpush1.bf16.msra.mxu0 %v1894
        %2490 = vmatprep.subr.bf16.mxu0 %v1897
        %2491 = vmatpush1.bf16.msra.mxu0 %v1896
        %2492 = vmatprep.subr.bf16.mxu0 %v1899
        %2493 = vmatpush1.bf16.msra.mxu0 %v1898
        %2494 = vmatprep.subr.bf16.mxu0 %v1901
        %2495 = vmatpush1.bf16.msra.mxu0 %v1900
        %2496 = vmatprep.subr.bf16.mxu0 %v1903
        %2497 = vmatpush1.bf16.msra.mxu0 %v1902
        %2498 = vmatprep.subr.bf16.mxu0 %v1905
        %2499 = vmatpush1.bf16.msra.mxu0 %v1904
        %2500 = vmatprep.subr.bf16.mxu0 %v1907
        %2501 = vmatpush1.bf16.msra.mxu0 %v1906
        %2502 = vmatprep.mubr.bf16.mxu0 %v921
        %2503 = vmatmul.mubr.bf16.gmra.mrb[0].mxu0 %v920
        %v2504 = vpop.f32.mrb[0].mxu0
        %v2505 = vadd.f32 %v2432, %v2504
        %v2506 = vpop.f32.mrb[0].mxu0
        %v2507 = vadd.f32 %v2434, %v2506
        %v2508 = vpop.f32.mrb[0].mxu0
        %v2509 = vadd.f32 %v2436, %v2508
        %v2510 = vpop.f32.mrb[0].mxu0
        %v2511 = vadd.f32 %v2438, %v2510
        %2512 = vmatprep.mubr.bf16.mxu0 %v937
        %2513 = vmatmul.mubr.bf16.gmra.mrb[0].mxu0 %v936
        %v2514 = vpop.f32.mrb[0].mxu0
        %v2515 = vadd.f32 %v2442, %v2514
        %v2516 = vpop.f32.mrb[0].mxu0
        %v2517 = vadd.f32 %v2444, %v2516
        %v2518 = vpop.f32.mrb[0].mxu0
        %v2519 = vadd.f32 %v2446, %v2518
        %v2520 = vpop.f32.mrb[0].mxu0
        %v2521 = vadd.f32 %v2448, %v2520
        %2522 = vmatprep.mubr.bf16.mxu0 %v953
        %2523 = vmatmul.mubr.bf16.gmra.mrb[0].mxu0 %v952
        %v2524 = vpop.f32.mrb[0].mxu0
        %v2525 = vadd.f32 %v2452, %v2524
        %v2526 = vpop.f32.mrb[0].mxu0
        %v2527 = vadd.f32 %v2454, %v2526
        %v2528 = vpop.f32.mrb[0].mxu0
        %v2529 = vadd.f32 %v2456, %v2528
        %v2530 = vpop.f32.mrb[0].mxu0
        %v2531 = vadd.f32 %v2458, %v2530
        %2532 = vmatprep.mubr.bf16.mxu0 %v969
        %2533 = vmatmul.mubr.bf16.gmra.mrb[0].mxu0 %v968
        %v2534 = vpop.f32.mrb[0].mxu0
        %v2535 = vadd.f32 %v2462, %v2534
        %v2536 = vpop.f32.mrb[0].mxu0
        %v2537 = vadd.f32 %v2464, %v2536
        %v2538 = vpop.f32.mrb[0].mxu0
        %v2539 = vadd.f32 %v2466, %v2538
        %v2540 = vpop.f32.mrb[0].mxu0
        %v2541 = vadd.f32 %v2468, %v2540
        %2542 = vdwg.mxu0
        %2543 = vmatprep.subr.bf16.mxu0 %v1909
        %2544 = vmatpush1.bf16.msra.mxu0 %v1908
        %2545 = vmatprep.subr.bf16.mxu0 %v1911
        %2546 = vmatpush1.bf16.msra.mxu0 %v1910
        %2547 = vmatprep.subr.bf16.mxu0 %v1913
        %2548 = vmatpush1.bf16.msra.mxu0 %v1912
        %2549 = vmatprep.subr.bf16.mxu0 %v1915
        %2550 = vmatpush1.bf16.msra.mxu0 %v1914
        %2551 = vmatprep.subr.bf16.mxu0 %v1917
        %2552 = vmatpush1.bf16.msra.mxu0 %v1916
        %2553 = vmatprep.subr.bf16.mxu0 %v1919
        %2554 = vmatpush1.bf16.msra.mxu0 %v1918
        %2555 = vmatprep.subr.bf16.mxu0 %v1921
        %2556 = vmatpush1.bf16.msra.mxu0 %v1920
        %2557 = vmatprep.subr.bf16.mxu0 %v1923
        %2558 = vmatpush1.bf16.msra.mxu0 %v1922
        %2559 = vmatprep.subr.bf16.mxu0 %v1925
        %2560 = vmatpush1.bf16.msra.mxu0 %v1924
        %2561 = vmatprep.subr.bf16.mxu0 %v1927
        %2562 = vmatpush1.bf16.msra.mxu0 %v1926
        %2563 = vmatprep.subr.bf16.mxu0 %v1929
        %2564 = vmatpush1.bf16.msra.mxu0 %v1928
        %2565 = vmatprep.subr.bf16.mxu0 %v1931
        %2566 = vmatpush1.bf16.msra.mxu0 %v1930
        %2567 = vmatprep.subr.bf16.mxu0 %v1933
        %2568 = vmatpush1.bf16.msra.mxu0 %v1932
        %2569 = vmatprep.subr.bf16.mxu0 %v1935
        %2570 = vmatpush1.bf16.msra.mxu0 %v1934
        %2571 = vmatprep.subr.bf16.mxu0 %v1937
        %2572 = vmatpush1.bf16.msra.mxu0 %v1936
        %2573 = vmatprep.subr.bf16.mxu0 %v1939
        %2574 = vmatpush1.bf16.msra.mxu0 %v1938
        %2575 = vmatprep.mubr.bf16.mxu0 %v923
        %2576 = vmatmul.mubr.bf16.gmra.mrb[0].mxu0 %v922
        %v2577 = vpop.f32.mrb[0].mxu0
        %v2578 = vadd.f32 %v2505, %v2577
        %v2579 = vpop.f32.mrb[0].mxu0
        %v2580 = vadd.f32 %v2507, %v2579
        %v2581 = vpop.f32.mrb[0].mxu0
        %v2582 = vadd.f32 %v2509, %v2581
        %v2583 = vpop.f32.mrb[0].mxu0
        %v2584 = vadd.f32 %v2511, %v2583
        %2585 = vmatprep.mubr.bf16.mxu0 %v939
        %2586 = vmatmul.mubr.bf16.gmra.mrb[0].mxu0 %v938
        %v2587 = vpop.f32.mrb[0].mxu0
        %v2588 = vadd.f32 %v2515, %v2587
        %v2589 = vpop.f32.mrb[0].mxu0
        %v2590 = vadd.f32 %v2517, %v2589
        %v2591 = vpop.f32.mrb[0].mxu0
        %v2592 = vadd.f32 %v2519, %v2591
        %v2593 = vpop.f32.mrb[0].mxu0
        %v2594 = vadd.f32 %v2521, %v2593
        %2595 = vmatprep.mubr.bf16.mxu0 %v955
        %2596 = vmatmul.mubr.bf16.gmra.mrb[0].mxu0 %v954
        %v2597 = vpop.f32.mrb[0].mxu0
        %v2598 = vadd.f32 %v2525, %v2597
        %v2599 = vpop.f32.mrb[0].mxu0
        %v2600 = vadd.f32 %v2527, %v2599
        %v2601 = vpop.f32.mrb[0].mxu0
        %v2602 = vadd.f32 %v2529, %v2601
        %v2603 = vpop.f32.mrb[0].mxu0
        %v2604 = vadd.f32 %v2531, %v2603
        %2605 = vmatprep.mubr.bf16.mxu0 %v971
        %2606 = vmatmul.mubr.bf16.gmra.mrb[0].mxu0 %v970
        %v2607 = vpop.f32.mrb[0].mxu0
        %v2608 = vadd.f32 %v2535, %v2607
        %v2609 = vpop.f32.mrb[0].mxu0
        %v2610 = vadd.f32 %v2537, %v2609
        %v2611 = vpop.f32.mrb[0].mxu0
        %v2612 = vadd.f32 %v2539, %v2611
        %v2613 = vpop.f32.mrb[0].mxu0
        %v2614 = vadd.f32 %v2541, %v2613
        %2615 = vdwg.mxu0
        %2616 = vmatprep.subr.bf16.mxu0 %v1941
        %2617 = vmatpush1.bf16.msra.mxu0 %v1940
        %2618 = vmatprep.subr.bf16.mxu0 %v1943
        %2619 = vmatpush1.bf16.msra.mxu0 %v1942
        %2620 = vmatprep.subr.bf16.mxu0 %v1945
        %2621 = vmatpush1.bf16.msra.mxu0 %v1944
        %2622 = vmatprep.subr.bf16.mxu0 %v1947
        %2623 = vmatpush1.bf16.msra.mxu0 %v1946
        %2624 = vmatprep.subr.bf16.mxu0 %v1949
        %2625 = vmatpush1.bf16.msra.mxu0 %v1948
        %2626 = vmatprep.subr.bf16.mxu0 %v1951
        %2627 = vmatpush1.bf16.msra.mxu0 %v1950
        %2628 = vmatprep.subr.bf16.mxu0 %v1953
        %2629 = vmatpush1.bf16.msra.mxu0 %v1952
        %2630 = vmatprep.subr.bf16.mxu0 %v1955
        %2631 = vmatpush1.bf16.msra.mxu0 %v1954
        %2632 = vmatprep.subr.bf16.mxu0 %v1957
        %2633 = vmatpush1.bf16.msra.mxu0 %v1956
        %2634 = vmatprep.subr.bf16.mxu0 %v1959
        %2635 = vmatpush1.bf16.msra.mxu0 %v1958
        %2636 = vmatprep.subr.bf16.mxu0 %v1961
        %2637 = vmatpush1.bf16.msra.mxu0 %v1960
        %2638 = vmatprep.subr.bf16.mxu0 %v1963
        %2639 = vmatpush1.bf16.msra.mxu0 %v1962
        %2640 = vmatprep.subr.bf16.mxu0 %v1965
        %2641 = vmatpush1.bf16.msra.mxu0 %v1964
        %2642 = vmatprep.subr.bf16.mxu0 %v1967
        %2643 = vmatpush1.bf16.msra.mxu0 %v1966
        %2644 = vmatprep.subr.bf16.mxu0 %v1969
        %2645 = vmatpush1.bf16.msra.mxu0 %v1968
        %2646 = vmatprep.subr.bf16.mxu0 %v1971
        %2647 = vmatpush1.bf16.msra.mxu0 %v1970
        %2648 = vmatprep.mubr.bf16.mxu0 %v925
        %2649 = vmatmul.mubr.bf16.gmra.mrb[0].mxu0 %v924
        %v2650 = vpop.f32.mrb[0].mxu0
        %v2651 = vadd.f32 %v2578, %v2650
        %v2652 = vpop.f32.mrb[0].mxu0
        %v2653 = vadd.f32 %v2580, %v2652
        %v2654 = vpop.f32.mrb[0].mxu0
        %v2655 = vadd.f32 %v2582, %v2654
        %v2656 = vpop.f32.mrb[0].mxu0
        %v2657 = vadd.f32 %v2584, %v2656
        %2658 = vmatprep.mubr.bf16.mxu0 %v941
        %2659 = vmatmul.mubr.bf16.gmra.mrb[0].mxu0 %v940
        %v2660 = vpop.f32.mrb[0].mxu0
        %v2661 = vadd.f32 %v2588, %v2660
        %v2662 = vpop.f32.mrb[0].mxu0
        %v2663 = vadd.f32 %v2590, %v2662
        %v2664 = vpop.f32.mrb[0].mxu0
        %v2665 = vadd.f32 %v2592, %v2664
        %v2666 = vpop.f32.mrb[0].mxu0
        %v2667 = vadd.f32 %v2594, %v2666
        %2668 = vmatprep.mubr.bf16.mxu0 %v957
        %2669 = vmatmul.mubr.bf16.gmra.mrb[0].mxu0 %v956
        %v2670 = vpop.f32.mrb[0].mxu0
        %v2671 = vadd.f32 %v2598, %v2670
        %v2672 = vpop.f32.mrb[0].mxu0
        %v2673 = vadd.f32 %v2600, %v2672
        %v2674 = vpop.f32.mrb[0].mxu0
        %v2675 = vadd.f32 %v2602, %v2674
        %v2676 = vpop.f32.mrb[0].mxu0
        %v2677 = vadd.f32 %v2604, %v2676
        %2678 = vmatprep.mubr.bf16.mxu0 %v973
        %2679 = vmatmul.mubr.bf16.gmra.mrb[0].mxu0 %v972
        %v2680 = vpop.f32.mrb[0].mxu0
        %v2681 = vadd.f32 %v2608, %v2680
        %v2682 = vpop.f32.mrb[0].mxu0
        %v2683 = vadd.f32 %v2610, %v2682
        %v2684 = vpop.f32.mrb[0].mxu0
        %v2685 = vadd.f32 %v2612, %v2684
        %v2686 = vpop.f32.mrb[0].mxu0
        %v2687 = vadd.f32 %v2614, %v2686
        %2688 = vdwg.mxu0
        %2689 = vmatprep.subr.bf16.mxu0 %v1973
        %2690 = vmatpush1.bf16.msra.mxu0 %v1972
        %2691 = vmatprep.subr.bf16.mxu0 %v1975
        %2692 = vmatpush1.bf16.msra.mxu0 %v1974
        %2693 = vmatprep.subr.bf16.mxu0 %v1977
        %2694 = vmatpush1.bf16.msra.mxu0 %v1976
        %2695 = vmatprep.subr.bf16.mxu0 %v1979
        %2696 = vmatpush1.bf16.msra.mxu0 %v1978
        %2697 = vmatprep.subr.bf16.mxu0 %v1981
        %2698 = vmatpush1.bf16.msra.mxu0 %v1980
        %2699 = vmatprep.subr.bf16.mxu0 %v1983
        %2700 = vmatpush1.bf16.msra.mxu0 %v1982
        %2701 = vmatprep.subr.bf16.mxu0 %v1985
        %2702 = vmatpush1.bf16.msra.mxu0 %v1984
        %2703 = vmatprep.subr.bf16.mxu0 %v1987
        %2704 = vmatpush1.bf16.msra.mxu0 %v1986
        %2705 = vmatprep.subr.bf16.mxu0 %v1989
        %2706 = vmatpush1.bf16.msra.mxu0 %v1988
        %2707 = vmatprep.subr.bf16.mxu0 %v1991
        %2708 = vmatpush1.bf16.msra.mxu0 %v1990
        %2709 = vmatprep.subr.bf16.mxu0 %v1993
        %2710 = vmatpush1.bf16.msra.mxu0 %v1992
        %2711 = vmatprep.subr.bf16.mxu0 %v1995
        %2712 = vmatpush1.bf16.msra.mxu0 %v1994
        %2713 = vmatprep.subr.bf16.mxu0 %v1997
        %2714 = vmatpush1.bf16.msra.mxu0 %v1996
        %2715 = vmatprep.subr.bf16.mxu0 %v1999
        %2716 = vmatpush1.bf16.msra.mxu0 %v1998
        %2717 = vmatprep.subr.bf16.mxu0 %v2001
        %2718 = vmatpush1.bf16.msra.mxu0 %v2000
        %2719 = vmatprep.subr.bf16.mxu0 %v2003
        %2720 = vmatpush1.bf16.msra.mxu0 %v2002
        %2721 = vmatprep.mubr.bf16.mxu0 %v927
        %2722 = vmatmul.mubr.bf16.gmra.mrb[0].mxu0 %v926
        %v2723 = vpop.f32.mrb[0].mxu0
        %v2724 = vadd.f32 %v2651, %v2723
        %v2725 = vpop.f32.mrb[0].mxu0
        %v2726 = vadd.f32 %v2653, %v2725
        %v2727 = vpop.f32.mrb[0].mxu0
        %v2728 = vadd.f32 %v2655, %v2727
        %v2729 = vpop.f32.mrb[0].mxu0
        %v2730 = vadd.f32 %v2657, %v2729
        %2731 = vmatprep.mubr.bf16.mxu0 %v943
        %2732 = vmatmul.mubr.bf16.gmra.mrb[0].mxu0 %v942
        %v2733 = vpop.f32.mrb[0].mxu0
        %v2734 = vadd.f32 %v2661, %v2733
        %v2735 = vpop.f32.mrb[0].mxu0
        %v2736 = vadd.f32 %v2663, %v2735
        %v2737 = vpop.f32.mrb[0].mxu0
        %v2738 = vadd.f32 %v2665, %v2737
        %v2739 = vpop.f32.mrb[0].mxu0
        %v2740 = vadd.f32 %v2667, %v2739
        %2741 = vmatprep.mubr.bf16.mxu0 %v959
        %2742 = vmatmul.mubr.bf16.gmra.mrb[0].mxu0 %v958
        %v2743 = vpop.f32.mrb[0].mxu0
        %v2744 = vadd.f32 %v2671, %v2743
        %v2745 = vpop.f32.mrb[0].mxu0
        %v2746 = vadd.f32 %v2673, %v2745
        %v2747 = vpop.f32.mrb[0].mxu0
        %v2748 = vadd.f32 %v2675, %v2747
        %v2749 = vpop.f32.mrb[0].mxu0
        %v2750 = vadd.f32 %v2677, %v2749
        %2751 = vmatprep.mubr.bf16.mxu0 %v975
        %2752 = vmatmul.mubr.bf16.gmra.mrb[0].mxu0 %v974
        %v2753 = vpop.f32.mrb[0].mxu0
        %v2754 = vadd.f32 %v2681, %v2753
        %v2755 = vpop.f32.mrb[0].mxu0
        %v2756 = vadd.f32 %v2683, %v2755
        %v2757 = vpop.f32.mrb[0].mxu0
        %v2758 = vadd.f32 %v2685, %v2757
        %v2759 = vpop.f32.mrb[0].mxu0
        %v2760 = vadd.f32 %v2687, %v2759
        %2761 = vdwg.mxu0
        %2762 = vmatprep.subr.bf16.mxu0 %v2005
        %2763 = vmatpush1.bf16.msra.mxu0 %v2004
        %2764 = vmatprep.subr.bf16.mxu0 %v2007
        %2765 = vmatpush1.bf16.msra.mxu0 %v2006
        %2766 = vmatprep.subr.bf16.mxu0 %v2009
        %2767 = vmatpush1.bf16.msra.mxu0 %v2008
        %2768 = vmatprep.subr.bf16.mxu0 %v2011
        %2769 = vmatpush1.bf16.msra.mxu0 %v2010
        %2770 = vmatprep.subr.bf16.mxu0 %v2013
        %2771 = vmatpush1.bf16.msra.mxu0 %v2012
        %2772 = vmatprep.subr.bf16.mxu0 %v2015
        %2773 = vmatpush1.bf16.msra.mxu0 %v2014
        %2774 = vmatprep.subr.bf16.mxu0 %v2017
        %2775 = vmatpush1.bf16.msra.mxu0 %v2016
        %2776 = vmatprep.subr.bf16.mxu0 %v2019
        %2777 = vmatpush1.bf16.msra.mxu0 %v2018
        %2778 = vmatprep.subr.bf16.mxu0 %v2021
        %2779 = vmatpush1.bf16.msra.mxu0 %v2020
        %2780 = vmatprep.subr.bf16.mxu0 %v2023
        %2781 = vmatpush1.bf16.msra.mxu0 %v2022
        %2782 = vmatprep.subr.bf16.mxu0 %v2025
        %2783 = vmatpush1.bf16.msra.mxu0 %v2024
        %2784 = vmatprep.subr.bf16.mxu0 %v2027
        %2785 = vmatpush1.bf16.msra.mxu0 %v2026
        %2786 = vmatprep.subr.bf16.mxu0 %v2029
        %2787 = vmatpush1.bf16.msra.mxu0 %v2028
        %2788 = vmatprep.subr.bf16.mxu0 %v2031
        %2789 = vmatpush1.bf16.msra.mxu0 %v2030
        %2790 = vmatprep.subr.bf16.mxu0 %v2033
        %2791 = vmatpush1.bf16.msra.mxu0 %v2032
        %2792 = vmatprep.subr.bf16.mxu0 %v2035
        %2793 = vmatpush1.bf16.msra.mxu0 %v2034
        %2794 = vmatprep.mubr.bf16.mxu0 %v929
        %2795 = vmatmul.mubr.bf16.gmra.mrb[0].mxu0 %v928
        %v2796 = vpop.f32.mrb[0].mxu0
        %v2797 = vadd.f32 %v2724, %v2796
        %v2798 = vpop.f32.mrb[0].mxu0
        %v2799 = vadd.f32 %v2726, %v2798
        %v2800 = vpop.f32.mrb[0].mxu0
        %v2801 = vadd.f32 %v2728, %v2800
        %v2802 = vpop.f32.mrb[0].mxu0
        %v2803 = vadd.f32 %v2730, %v2802
        %2804 = vmatprep.mubr.bf16.mxu0 %v945
        %2805 = vmatmul.mubr.bf16.gmra.mrb[0].mxu0 %v944
        %v2806 = vpop.f32.mrb[0].mxu0
        %v2807 = vadd.f32 %v2734, %v2806
        %v2808 = vpop.f32.mrb[0].mxu0
        %v2809 = vadd.f32 %v2736, %v2808
        %v2810 = vpop.f32.mrb[0].mxu0
        %v2811 = vadd.f32 %v2738, %v2810
        %v2812 = vpop.f32.mrb[0].mxu0
        %v2813 = vadd.f32 %v2740, %v2812
        %2814 = vmatprep.mubr.bf16.mxu0 %v961
        %2815 = vmatmul.mubr.bf16.gmra.mrb[0].mxu0 %v960
        %v2816 = vpop.f32.mrb[0].mxu0
        %v2817 = vadd.f32 %v2744, %v2816
        %v2818 = vpop.f32.mrb[0].mxu0
        %v2819 = vadd.f32 %v2746, %v2818
        %v2820 = vpop.f32.mrb[0].mxu0
        %v2821 = vadd.f32 %v2748, %v2820
        %v2822 = vpop.f32.mrb[0].mxu0
        %v2823 = vadd.f32 %v2750, %v2822
        %2824 = vmatprep.mubr.bf16.mxu0 %v977
        %2825 = vmatmul.mubr.bf16.gmra.mrb[0].mxu0 %v976
        %v2826 = vpop.f32.mrb[0].mxu0
        %v2827 = vadd.f32 %v2754, %v2826
        %v2828 = vpop.f32.mrb[0].mxu0
        %v2829 = vadd.f32 %v2756, %v2828
        %v2830 = vpop.f32.mrb[0].mxu0
        %v2831 = vadd.f32 %v2758, %v2830
        %v2832 = vpop.f32.mrb[0].mxu0
        %v2833 = vadd.f32 %v2760, %v2832
        %2834 = vdwg.mxu0
        %2835 = vmatprep.subr.bf16.mxu0 %v2037
        %2836 = vmatpush1.bf16.msra.mxu0 %v2036
        %2837 = vmatprep.subr.bf16.mxu0 %v2039
        %2838 = vmatpush1.bf16.msra.mxu0 %v2038
        %2839 = vmatprep.subr.bf16.mxu0 %v2041
        %2840 = vmatpush1.bf16.msra.mxu0 %v2040
        %2841 = vmatprep.subr.bf16.mxu0 %v2043
        %2842 = vmatpush1.bf16.msra.mxu0 %v2042
        %2843 = vmatprep.subr.bf16.mxu0 %v2045
        %2844 = vmatpush1.bf16.msra.mxu0 %v2044
        %2845 = vmatprep.subr.bf16.mxu0 %v2047
        %2846 = vmatpush1.bf16.msra.mxu0 %v2046
        %2847 = vmatprep.subr.bf16.mxu0 %v2049
        %2848 = vmatpush1.bf16.msra.mxu0 %v2048
        %2849 = vmatprep.subr.bf16.mxu0 %v2051
        %2850 = vmatpush1.bf16.msra.mxu0 %v2050
        %2851 = vmatprep.subr.bf16.mxu0 %v2053
        %2852 = vmatpush1.bf16.msra.mxu0 %v2052
        %2853 = vmatprep.subr.bf16.mxu0 %v2055
        %2854 = vmatpush1.bf16.msra.mxu0 %v2054
        %2855 = vmatprep.subr.bf16.mxu0 %v2057
        %2856 = vmatpush1.bf16.msra.mxu0 %v2056
        %2857 = vmatprep.subr.bf16.mxu0 %v2059
        %2858 = vmatpush1.bf16.msra.mxu0 %v2058
        %2859 = vmatprep.subr.bf16.mxu0 %v2061
        %2860 = vmatpush1.bf16.msra.mxu0 %v2060
        %2861 = vmatprep.subr.bf16.mxu0 %v2063
        %2862 = vmatpush1.bf16.msra.mxu0 %v2062
        %2863 = vmatprep.subr.bf16.mxu0 %v2065
        %2864 = vmatpush1.bf16.msra.mxu0 %v2064
        %2865 = vmatprep.subr.bf16.mxu0 %v2067
        %2866 = vmatpush1.bf16.msra.mxu0 %v2066
        %2867 = vmatprep.mubr.bf16.mxu0 %v931
        %2868 = vmatmul.mubr.bf16.gmra.mrb[0].mxu0 %v930
        %v2869 = vpop.f32.mrb[0].mxu0
        %v2870 = vadd.f32 %v2797, %v2869
        %v2871 = vpop.f32.mrb[0].mxu0
        %v2872 = vadd.f32 %v2799, %v2871
        %v2873 = vpop.f32.mrb[0].mxu0
        %v2874 = vadd.f32 %v2801, %v2873
        %v2875 = vpop.f32.mrb[0].mxu0
        %v2876 = vadd.f32 %v2803, %v2875
        %2877 = vmatprep.mubr.bf16.mxu0 %v947
        %2878 = vmatmul.mubr.bf16.gmra.mrb[0].mxu0 %v946
        %v2879 = vpop.f32.mrb[0].mxu0
        %v2880 = vadd.f32 %v2807, %v2879
        %v2881 = vpop.f32.mrb[0].mxu0
        %v2882 = vadd.f32 %v2809, %v2881
        %v2883 = vpop.f32.mrb[0].mxu0
        %v2884 = vadd.f32 %v2811, %v2883
        %v2885 = vpop.f32.mrb[0].mxu0
        %v2886 = vadd.f32 %v2813, %v2885
        %2887 = vmatprep.mubr.bf16.mxu0 %v963
        %2888 = vmatmul.mubr.bf16.gmra.mrb[0].mxu0 %v962
        %v2889 = vpop.f32.mrb[0].mxu0
        %v2890 = vadd.f32 %v2817, %v2889
        %v2891 = vpop.f32.mrb[0].mxu0
        %v2892 = vadd.f32 %v2819, %v2891
        %v2893 = vpop.f32.mrb[0].mxu0
        %v2894 = vadd.f32 %v2821, %v2893
        %v2895 = vpop.f32.mrb[0].mxu0
        %v2896 = vadd.f32 %v2823, %v2895
        %2897 = vmatprep.mubr.bf16.mxu0 %v979
        %2898 = vmatmul.mubr.bf16.gmra.mrb[0].mxu0 %v978
        %v2899 = vpop.f32.mrb[0].mxu0
        %v2900 = vadd.f32 %v2827, %v2899
        %v2901 = vpop.f32.mrb[0].mxu0
        %v2902 = vadd.f32 %v2829, %v2901
        %v2903 = vpop.f32.mrb[0].mxu0
        %v2904 = vadd.f32 %v2831, %v2903
        %v2905 = vpop.f32.mrb[0].mxu0
        %v2906 = vadd.f32 %v2833, %v2905
        %2907 = vdwg.mxu0
        %v2908 = vadd.f32 %v388, %v2870
        %v2909 = vadd.f32 %v389, %v2872
        %v2910 = vadd.f32 %v390, %v2874
        %v2911 = vadd.f32 %v391, %v2876
        %v2912 = vadd.f32 %v392, %v2880
        %v2913 = vadd.f32 %v393, %v2882
        %v2914 = vadd.f32 %v394, %v2884
        %v2915 = vadd.f32 %v395, %v2886
        %v2916 = vadd.f32 %v396, %v2890
        %v2917 = vadd.f32 %v397, %v2892
        %v2918 = vadd.f32 %v398, %v2894
        %v2919 = vadd.f32 %v399, %v2896
        %v2920 = vadd.f32 %v400, %v2900
        %v2921 = vadd.f32 %v401, %v2902
        %v2922 = vadd.f32 %v402, %v2904
        %v2923 = vadd.f32 %v403, %v2906
        %2924 = vst [vmem:[%s359] sm:$0xff] %v2908
        %2925 = vst [vmem:[%s359 + $0x8] sm:$0xff] %v2909
        %2926 = vst [vmem:[%s359 + $0x10] sm:$0xff] %v2910
        %2927 = vst [vmem:[%s359 + $0x18] sm:$0xff] %v2911
        %2928 = vst [vmem:[%s359 + $0x20] sm:$0xff] %v2912
        %2929 = vst [vmem:[%s359 + $0x28] sm:$0xff] %v2913
        %2930 = vst [vmem:[%s359 + $0x30] sm:$0xff] %v2914
        %2931 = vst [vmem:[%s359 + $0x38] sm:$0xff] %v2915
        %2932 = vst [vmem:[%s359 + $0x40] sm:$0xff] %v2916
        %2933 = vst [vmem:[%s359 + $0x48] sm:$0xff] %v2917
        %2934 = vst [vmem:[%s359 + $0x50] sm:$0xff] %v2918
        %2935 = vst [vmem:[%s359 + $0x58] sm:$0xff] %v2919
        %2936 = vst [vmem:[%s359 + $0x60] sm:$0xff] %v2920
        %2937 = vst [vmem:[%s359 + $0x68] sm:$0xff] %v2921
        %2938 = vst [vmem:[%s359 + $0x70] sm:$0xff] %v2922
        %2939 = vst [vmem:[%s359 + $0x78] sm:$0xff] %v2923
        %p2940 = scmp.eq.s32.totalorder %s34, 98
        // Predicated region
        $region57: #{tpu_custom_call.1} parent=35 // pred_check
          %p2941 = pneg %p2940
        $region58: #{tpu_custom_call.1} parent=35 // pred_check_branch
          %2943 = sbr.rel (%p2941) target = $region60
        $region59: #{tpu_custom_call.1} parent=35 // pred_region
          %v2944 = vld [vmem:[%s359] sm:$0xff]
          %v2945 = vld [vmem:[%s359 + $0x8] sm:$0xff]
          %v2946 = vld [vmem:[%s359 + $0x10] sm:$0xff]
          %v2947 = vld [vmem:[%s359 + $0x18] sm:$0xff]
          %v2948 = vld [vmem:[%s359 + $0x20] sm:$0xff]
          %v2949 = vld [vmem:[%s359 + $0x28] sm:$0xff]
          %v2950 = vld [vmem:[%s359 + $0x30] sm:$0xff]
          %v2951 = vld [vmem:[%s359 + $0x38] sm:$0xff]
          %v2952 = vld [vmem:[%s359 + $0x40] sm:$0xff]
          %v2953 = vld [vmem:[%s359 + $0x48] sm:$0xff]
          %v2954 = vld [vmem:[%s359 + $0x50] sm:$0xff]
          %v2955 = vld [vmem:[%s359 + $0x58] sm:$0xff]
          %v2956 = vld [vmem:[%s359 + $0x60] sm:$0xff]
          %v2957 = vld [vmem:[%s359 + $0x68] sm:$0xff]
          %v2958 = vld [vmem:[%s359 + $0x70] sm:$0xff]
          %v2959 = vld [vmem:[%s359 + $0x78] sm:$0xff]
          %v2960 = vld [vmem:[%s311] sm:$0x3]
          %v2962 = vlaneseq
          %v2963 = vshrl.u32 %v2962, 7
          %v2964 = vsub.s32 0, %v2963
          %v2965 = vrot.slane %v2960, %v2964
          %v2966 = vlaneseq
          %v2967 = vshrl.u32 %v2966, 7
          %v2968 = vsub.s32 1, %v2967
          %v2969 = vrot.slane %v2960, %v2968
          %v2972 = vmul.f32 %v2944, %v2965
          %v2973 = vmul.f32 %v2945, %v2969
          %v2974 = vmul.f32 %v2946, %v2965
          %v2975 = vmul.f32 %v2947, %v2969
          %v2976 = vmul.f32 %v2948, %v2965
          %v2977 = vmul.f32 %v2949, %v2969
          %v2978 = vmul.f32 %v2950, %v2965
          %v2979 = vmul.f32 %v2951, %v2969
          %v2980 = vmul.f32 %v2952, %v2965
          %v2981 = vmul.f32 %v2953, %v2969
          %v2982 = vmul.f32 %v2954, %v2965
          %v2983 = vmul.f32 %v2955, %v2969
          %v2984 = vmul.f32 %v2956, %v2965
          %v2985 = vmul.f32 %v2957, %v2969
          %v2986 = vmul.f32 %v2958, %v2965
          %v2987 = vmul.f32 %v2959, %v2969
          %v2988 = vld [vmem:[%s320] sm:$0x3]
          %v2990 = vlaneseq
          %v2991 = vshrl.u32 %v2990, 7
          %v2992 = vsub.s32 0, %v2991
          %v2993 = vrot.slane %v2988, %v2992
          %v2994 = vlaneseq
          %v2995 = vshrl.u32 %v2994, 7
          %v2996 = vsub.s32 1, %v2995
          %v2997 = vrot.slane %v2988, %v2996
          %v3000 = vadd.f32 %v2972, %v2993
          %v3001 = vadd.f32 %v2973, %v2997
          %v3002 = vadd.f32 %v2974, %v2993
          %v3003 = vadd.f32 %v2975, %v2997
          %v3004 = vadd.f32 %v2976, %v2993
          %v3005 = vadd.f32 %v2977, %v2997
          %v3006 = vadd.f32 %v2978, %v2993
          %v3007 = vadd.f32 %v2979, %v2997
          %v3008 = vadd.f32 %v2980, %v2993
          %v3009 = vadd.f32 %v2981, %v2997
          %v3010 = vadd.f32 %v2982, %v2993
          %v3011 = vadd.f32 %v2983, %v2997
          %v3012 = vadd.f32 %v2984, %v2993
          %v3013 = vadd.f32 %v2985, %v2997
          %v3014 = vadd.f32 %v2986, %v2993
          %v3015 = vadd.f32 %v2987, %v2997
          %v3016 = vmax.f32 %v3000, 0.0
          %v3017 = vmax.f32 %v3001, 0.0
          %v3018 = vmax.f32 %v3002, 0.0
          %v3019 = vmax.f32 %v3003, 0.0
          %v3020 = vmax.f32 %v3004, 0.0
          %v3021 = vmax.f32 %v3005, 0.0
          %v3022 = vmax.f32 %v3006, 0.0
          %v3023 = vmax.f32 %v3007, 0.0
          %v3024 = vmax.f32 %v3008, 0.0
          %v3025 = vmax.f32 %v3009, 0.0
          %v3026 = vmax.f32 %v3010, 0.0
          %v3027 = vmax.f32 %v3011, 0.0
          %v3028 = vmax.f32 %v3012, 0.0
          %v3029 = vmax.f32 %v3013, 0.0
          %v3030 = vmax.f32 %v3014, 0.0
          %v3031 = vmax.f32 %v3015, 0.0
          %3032 = vst [vmem:[%s359] sm:$0xff] %v3016
          %3033 = vst [vmem:[%s359 + $0x8] sm:$0xff] %v3017
          %3034 = vst [vmem:[%s359 + $0x10] sm:$0xff] %v3018
          %3035 = vst [vmem:[%s359 + $0x18] sm:$0xff] %v3019
          %3036 = vst [vmem:[%s359 + $0x20] sm:$0xff] %v3020
          %3037 = vst [vmem:[%s359 + $0x28] sm:$0xff] %v3021
          %3038 = vst [vmem:[%s359 + $0x30] sm:$0xff] %v3022
          %3039 = vst [vmem:[%s359 + $0x38] sm:$0xff] %v3023
          %3040 = vst [vmem:[%s359 + $0x40] sm:$0xff] %v3024
          %3041 = vst [vmem:[%s359 + $0x48] sm:$0xff] %v3025
          %3042 = vst [vmem:[%s359 + $0x50] sm:$0xff] %v3026
          %3043 = vst [vmem:[%s359 + $0x58] sm:$0xff] %v3027
          %3044 = vst [vmem:[%s359 + $0x60] sm:$0xff] %v3028
          %3045 = vst [vmem:[%s359 + $0x68] sm:$0xff] %v3029
          %3046 = vst [vmem:[%s359 + $0x70] sm:$0xff] %v3030
          %3047 = vst [vmem:[%s359 + $0x78] sm:$0xff] %v3031
        $region60: #{tpu_custom_call.1} parent=35 // pred_fallthru
          _
        %s3048 = sand.u32 %s164, 1
        %s3049 = scalar_lea.sflag [#allocation4], %s3048
        %s3050 = sand.u32 %s164, 1
        %s3051 = smul.addr %s3050, 128
        %s3052 = scalar_lea.vmem [#allocation10], %s3051
        // Predicated region
        $region61: #{tpu_custom_call.1} parent=35 // pred_check
          %p3053 = pneg %p174
        $region62: #{tpu_custom_call.1} parent=35 // pred_check_branch
          %3055 = sbr.rel (%p3053) target = $region64
        $region63: #{tpu_custom_call.1} parent=35 // pred_region
          %s3056 = smul.u32 8, %s32
          %s3057 = smul.u32 2, %s33
          %s3059 = ssub.s32 2048, 2048
          %3060 = vsyncadd %s3049, %s3059
          %s3061 = smul.addr %s3056, 4
          %s3062 = sadd.s32 %s3057, %s3061
          %s3063 = smul.addr %s3062, 128
          %s3064 = scalar_lea.hbm %s4, %s3063
          %s3065 = sshll.u32 %s3052, 4
          %s3066 = int_to_ptr.vmem [resolvable:$true] %s3065
          %3071 = dma.vmem_to_hbm [thread:$0]  %s3066, 2048, %s3064, %s3049, 256, 512, 16
        $region64: #{tpu_custom_call.1} parent=35 // pred_fallthru
          _
      $region36: #{tpu_custom_call.1} parent=5 // pred_fallthru
        _
      %p3072 = scmp.le.s32.totalorder 2, %s22
      // Predicated region
      $region65: #{tpu_custom_call.1} parent=5 // pred_check
        %p3073 = pneg %p3072
      $region66: #{tpu_custom_call.1} parent=5 // pred_check_branch
        %3075 = sbr.rel (%p3073) target = $region68
      $region67: #{tpu_custom_call.1} parent=5 // pred_region
        %s3076 = ssub.s32 %s22, 2
        // Predicated region
        $region69: #{tpu_custom_call.1} parent=67 // pred_check
          %p3077 = pneg %p180
        $region70: #{tpu_custom_call.1} parent=67 // pred_check_branch
          %3079 = sbr.rel (%p3077) target = $region72
        $region71: #{tpu_custom_call.1} parent=67 // pred_region
          %s3080 = sand.u32 %s165, 1
          %s3081 = scalar_lea.sflag [#allocation4], %s3080
          %s3082 = sand.u32 %s165, 1
          %s3083 = smul.addr %s3082, 128
          %s3084 = scalar_lea.vmem [#allocation10], %s3083
          %3085 = dma.done %s3081, 2048
        $region72: #{tpu_custom_call.1} parent=67 // pred_fallthru
          _
      $region68: #{tpu_custom_call.1} parent=5 // pred_fallthru
        _
    $region6: #{tpu_custom_call.1} parent=1 // loop_footer
      %s26 = sadd.s32 1, %s22
    $region7: #{tpu_custom_call.1} parent=1 // loop_footer_branch
      %21 = sbr.rel target = $region3
    $region8: #{tpu_custom_call.1} parent=1 // loop_exit
      _
    %3086 = vsyncpa [#allocation3], 1
    %s3087 = scalar_lea.sflag [#allocation3], 1
    %3088 = vsyncpa %s3087, 1
    %3089 = vsyncpa [#allocation6], 1
    %s3090 = scalar_lea.sflag [#allocation6], 1
    %3091 = vsyncpa %s3090, 1
    %3092 = vsyncpa [#allocation9], 1
    %s3093 = scalar_lea.sflag [#allocation9], 1
    %3094 = vsyncpa %s3093, 1
    %3095 = vsyncpa [#allocation4], 1
    %s3096 = scalar_lea.sflag [#allocation4], 1
    %3097 = vsyncpa %s3096, 1

</llo_original>
